<compile_context>
chip_gen: v6e
topology: v6e:2x2x1
jax: 0.10.0
libtpu: 0.0.40
codegen_flags: <defaults>
</compile_context>

<pallas_src>
import functools
import math

import jax
import jax.numpy as jnp
from jax import lax
from jax.experimental import pallas as pl
from jax.experimental.pallas import tpu as pltpu

F_IN = 3     # RNN input_size
H = 32       # RNN hidden_size


def _round_up(v, m):
    return -(-v // m) * m


def percnn_kernel(x_ref, h0_ref, wih_ref, whh_ref, brnn_ref,
                  w1_ref, b1_ref, w2_ref, b2_ref,
                  out_ref, hT_ref,
                  h_scr,
                  *, seq_len, t_blk, needs_guard):
    t_idx = pl.program_id(1)

    # New batch block -> (re)load the initial hidden state into the carry.
    @pl.when(t_idx == 0)
    def _():
        h_scr[...] = h0_ref[...]

    # Loop-invariant weights (hoisted out of the recurrence).
    wih = wih_ref[...]        # (H, 3)
    whh = whh_ref[...]        # (H, H)   used as W_hh @ h
    brnn = brnn_ref[...]      # (H, 1)   b_ih + b_hh
    w1 = w1_ref[...]          # (H, H)
    b1 = b1_ref[...]          # (H, 1)
    w2c = w2_ref[...]         # (H, 1)
    b2 = b2_ref[0]            # scalar from SMEM

    if needs_guard:
        # Number of real (non-padded) timesteps in this time block.
        valid = jnp.minimum(t_blk, seq_len - t_idx * t_blk)

    def step(t, h):
        # ---- input projection: tiny VPU work, independent of the h chain.
        x_t = x_ref[t]                                  # (3, B_blk)
        xp = brnn
        for f in range(F_IN):
            xp = xp + wih[:, f:f + 1] * x_t[f:f + 1, :]  # (H, B_blk)

        # ---- serial critical path: W_hh @ h -> add -> tanh.
        h_new = jnp.tanh(xp + jnp.dot(whh, h, preferred_element_type=jnp.float32))
        if needs_guard:
            h_new = jnp.where(t < valid, h_new, h)       # freeze h on padded steps

        # ---- MLP head (off the dependent chain; overlaps the next step).
        z = jnp.dot(w1, h_new, preferred_element_type=jnp.float32) + b1   # (H, B)
        z = z * jax.nn.sigmoid(z)                                          # SiLU
        y = jnp.sum(z * w2c, axis=0, keepdims=True) + b2                   # (1, B)
        out_ref[pl.ds(t, 1), :] = y
        return h_new

    h_last = lax.fori_loop(0, t_blk, step, h_scr[...], unroll=min(8, t_blk))
    h_scr[...] = h_last        # carry to next time block
    hT_ref[...] = h_last       # last write (at t_idx == nt-1) is what lands in HBM


def percnn_forward(x, h0, params):
    """x: (B, T, 3) f32, h0: (1, B, 32) f32 -> (out (B, T, 1), hidden (1, B, 32))."""
    B, T, F = x.shape
    assert F == F_IN

    # ---- batch tiling: batch lives on lanes. <=128 -> one block padded to 8;
    #      >128 -> 128-lane blocks ("parallel" axis > 1 -> engages v7x's 2nd TC).
    B_pad8 = _round_up(B, 8)
    if B_pad8 <= 128:
        B_blk = B_pad8
        B_pad = B_pad8
    else:
        B_blk = 128
        B_pad = _round_up(B, 128)
    nb = B_pad // B_blk

    # ---- time tiling: bounded T_blk (VMEM-safe on v5e/v6e/v7x); pad T and
    #      guard the tail instead of ever taking T_blk = T for huge T.
    if T <= 512:
        T_blk = _round_up(T, 8)
    elif T % 512 == 0:
        T_blk = 512
    elif T % 256 == 0:
        T_blk = 256
    elif T % 128 == 0:
        T_blk = 128
    else:
        T_blk = 256
    T_pad = _round_up(T, T_blk)
    nt = T_pad // T_blk
    needs_guard = (T_pad != T)

    # ---- layout: batch on lanes everywhere.
    xf = x.astype(jnp.float32)
    x_p = jnp.pad(xf, ((0, B_pad - B), (0, T_pad - T), (0, 0)))
    x_tm = jnp.transpose(x_p, (1, 2, 0))                                # (T_pad, 3, B_pad)
    h0_p = jnp.pad(h0[0].astype(jnp.float32), ((0, B_pad - B), (0, 0))).T  # (H, B_pad)

    wih = params["w_ih"].astype(jnp.float32)                            # (H, 3)
    whh = params["w_hh"].astype(jnp.float32)                            # (H, H)
    brnn = (params["b_ih"] + params["b_hh"]).astype(jnp.float32).reshape(H, 1)
    w1 = params["w1"].astype(jnp.float32)                               # (H, H)
    b1 = params["b1"].astype(jnp.float32).reshape(H, 1)
    w2c = params["w2"].astype(jnp.float32).reshape(H, 1)                # (H, 1)
    b2 = params["b2"].astype(jnp.float32).reshape(1)                    # (1,) -> SMEM

    def rep(shape):
        return pl.BlockSpec(shape, lambda b, t: (0,) * len(shape))

    kernel = functools.partial(percnn_kernel, seq_len=T, t_blk=T_blk,
                               needs_guard=needs_guard)

    out_tm, hT = pl.pallas_call(
        kernel,
        out_shape=(jax.ShapeDtypeStruct((T_pad, B_pad), jnp.float32),
                   jax.ShapeDtypeStruct((H, B_pad), jnp.float32)),
        grid_spec=pltpu.PrefetchScalarGridSpec(
            num_scalar_prefetch=0,
            grid=(nb, nt),
            in_specs=[
                pl.BlockSpec((T_blk, F_IN, B_blk), lambda b, t: (t, 0, b)),  # x
                pl.BlockSpec((H, B_blk), lambda b, t: (0, b)),               # h0
                rep((H, F_IN)),                                              # W_ih
                rep((H, H)),                                                 # W_hh
                rep((H, 1)),                                                 # b_ih+b_hh
                rep((H, H)),                                                 # W1
                rep((H, 1)),                                                 # b1
                rep((H, 1)),                                                 # w2 column
                pl.BlockSpec(memory_space=pltpu.MemorySpace.SMEM),           # b2 scalar
            ],
            out_specs=(
                pl.BlockSpec((T_blk, B_blk), lambda b, t: (t, b)),           # y slab
                pl.BlockSpec((H, B_blk), lambda b, t: (0, b)),               # h_T
            ),
            scratch_shapes=[
                pltpu.VMEM((H, B_blk), jnp.float32),      # carried hidden state
            ],
        ),
        compiler_params=pltpu.CompilerParams(
            dimension_semantics=("parallel", "arbitrary"),
            vmem_limit_bytes=32 * 1024 * 1024),
    )(x_tm, h0_p, wih, whh, brnn, w1, b1, w2c, b2)

    out = jnp.transpose(out_tm[:T, :B], (1, 0))[..., None]    # (B, T, 1)
    hidden = jnp.transpose(hT[:, :B], (1, 0))[None]           # (1, B, H)
    return out, hidden


def init_params(key):
    """Deterministic init mimicking PyTorch's uniform(-1/sqrt(fan), 1/sqrt(fan))."""
    ks = jax.random.split(key, 8)
    lim = 1.0 / math.sqrt(H)
    u = lambda kk, shape: jax.random.uniform(kk, shape, jnp.float32, -lim, lim)
    return {
        "w_ih": u(ks[0], (H, F_IN)),
        "w_hh": u(ks[1], (H, H)),
        "b_ih": u(ks[2], (H,)),
        "b_hh": u(ks[3], (H,)),
        "w1":   u(ks[4], (H, H)),
        "b1":   u(ks[5], (H,)),
        "w2":   u(ks[6], (1, H)),
        "b2":   u(ks[7], (1,)),
    }


def percnn_reference(x, h0, p):
    """Pure-JAX reference of the PyTorch forward (for correctness check)."""
    B, T, _ = x.shape
    h = h0[0]
    outs = []
    for t in range(T):
        h = jnp.tanh(x[:, t, :] @ p["w_ih"].T + p["b_ih"] + h @ p["w_hh"].T + p["b_hh"])
        z = h @ p["w1"].T + p["b1"]
        z = z * jax.nn.sigmoid(z)
        outs.append(z @ p["w2"].T + p["b2"])
    return jnp.stack(outs, axis=1), h[None]


if __name__ == "__main__":
    key = jax.random.PRNGKey(0)
    k_x, k_h, k_p = jax.random.split(key, 3)

    B, T = 2, 8
    x = jax.random.normal(k_x, (B, T, F_IN), jnp.float32)      # input (batch_first)
    h0 = jax.random.normal(k_h, (1, B, H), jnp.float32)        # hidden (1, B, H)
    params = init_params(k_p)

    out, hidden = percnn_forward(x, h0, params)
    out = jax.block_until_ready(out)
    hidden = jax.block_until_ready(hidden)

    ref_out, ref_hidden = percnn_reference(x, h0, params)
    assert out.shape == (B, T, 1) and hidden.shape == (1, B, H)
    assert jnp.allclose(out, ref_out, rtol=1e-4, atol=1e-4)
    assert jnp.allclose(hidden, ref_hidden, rtol=1e-4, atol=1e-4)

    # Second case exercising batch padding, time padding and the tail guard.
    B2, T2 = 5, 13
    x2 = jax.random.normal(jax.random.PRNGKey(1), (B2, T2, F_IN), jnp.float32)
    h02 = jax.random.normal(jax.random.PRNGKey(2), (1, B2, H), jnp.float32)
    out2, hid2 = percnn_forward(x2, h02, params)
    out2 = jax.block_until_ready(out2)
    hid2 = jax.block_until_ready(hid2)
    r_out2, r_hid2 = percnn_reference(x2, h02, params)
    assert out2.shape == (B2, T2, 1) and hid2.shape == (1, B2, H)
    assert jnp.allclose(out2, r_out2, rtol=1e-4, atol=1e-4)
    assert jnp.allclose(hid2, r_hid2, rtol=1e-4, atol=1e-4)

    print("KERNEL_OK")
</pallas_src>

<mosaic_0001>
module attributes {stable_mosaic.version = 11 : i64} {
  func.func @percnn_kernel(%arg0: i32, %arg1: i32, %arg2: memref<8x3x8xf32, #tpu.memory_space<vmem>>, %arg3: memref<32x8xf32, #tpu.memory_space<vmem>>, %arg4: memref<32x3xf32, #tpu.memory_space<vmem>>, %arg5: memref<32x32xf32, #tpu.memory_space<vmem>>, %arg6: memref<32x1xf32, #tpu.memory_space<vmem>>, %arg7: memref<32x32xf32, #tpu.memory_space<vmem>>, %arg8: memref<32x1xf32, #tpu.memory_space<vmem>>, %arg9: memref<32x1xf32, #tpu.memory_space<vmem>>, %arg10: memref<1xf32, #tpu.memory_space<smem>>, %arg11: memref<8x8xf32, #tpu.memory_space<vmem>>, %arg12: memref<32x8xf32, #tpu.memory_space<vmem>>, %arg13: memref<32x8xf32, #tpu.memory_space<vmem>>) attributes {dimension_semantics = [#tpu.dimension_semantics<parallel>, #tpu.dimension_semantics<arbitrary>], iteration_bounds = array<i64: 1, 1>, scalar_prefetch = 0 : i64, scratch_operands = 1 : i64, tpu.core_type = #tpu.core_type<tc>, window_params = [{transform_indices = @transform_0, window_bounds = array<i64: 8, 3, 8>}, {transform_indices = @transform_1, window_bounds = array<i64: 32, 8>}, {pipeline_mode = #tpu.pipeline_mode<synchronous>, transform_indices = @transform_2, window_bounds = array<i64: 32, 3>}, {pipeline_mode = #tpu.pipeline_mode<synchronous>, transform_indices = @transform_3, window_bounds = array<i64: 32, 32>}, {pipeline_mode = #tpu.pipeline_mode<synchronous>, transform_indices = @transform_4, window_bounds = array<i64: 32, 1>}, {pipeline_mode = #tpu.pipeline_mode<synchronous>, transform_indices = @transform_5, window_bounds = array<i64: 32, 32>}, {pipeline_mode = #tpu.pipeline_mode<synchronous>, transform_indices = @transform_6, window_bounds = array<i64: 32, 1>}, {pipeline_mode = #tpu.pipeline_mode<synchronous>, transform_indices = @transform_7, window_bounds = array<i64: 32, 1>}, {transform_indices = @transform_8, window_bounds = array<i64: 1>}, {transform_indices = @transform_9, window_bounds = array<i64: 8, 8>}, {transform_indices = @transform_10, window_bounds = array<i64: 32, 8>}]} {
    %c0_i32 = arith.constant 0 : i32
    %0 = arith.cmpi eq, %arg1, %c0_i32 : i32
    %1 = arith.extui %0 : i1 to i32
    %c0_i32_0 = arith.constant 0 : i32
    %2 = arith.cmpi ne, %1, %c0_i32_0 : i32
    scf.if %2 {
      %c0_75 = arith.constant 0 : index
      %c0_76 = arith.constant 0 : index
      %349 = vector.load %arg3[%c0_75, %c0_76] : memref<32x8xf32, #tpu.memory_space<vmem>>, vector<32x8xf32>
      %c0_77 = arith.constant 0 : index
      %c0_78 = arith.constant 0 : index
      %350 = vector.load %arg13[%c0_77, %c0_78] : memref<32x8xf32, #tpu.memory_space<vmem>>, vector<32x8xf32>
      tpu.vector_store %arg13[%c0_77, %c0_78], %349 {strides = array<i32>} : memref<32x8xf32, #tpu.memory_space<vmem>>, vector<32x8xf32>,
    } else {
    }
    %c0 = arith.constant 0 : index
    %c0_1 = arith.constant 0 : index
    %3 = vector.load %arg4[%c0, %c0_1] : memref<32x3xf32, #tpu.memory_space<vmem>>, vector<32x3xf32>
    %c0_2 = arith.constant 0 : index
    %c0_3 = arith.constant 0 : index
    %4 = vector.load %arg5[%c0_2, %c0_3] : memref<32x32xf32, #tpu.memory_space<vmem>>, vector<32x32xf32>
    %c0_4 = arith.constant 0 : index
    %c0_5 = arith.constant 0 : index
    %5 = vector.load %arg6[%c0_4, %c0_5] : memref<32x1xf32, #tpu.memory_space<vmem>>, vector<32x1xf32>
    %c0_6 = arith.constant 0 : index
    %c0_7 = arith.constant 0 : index
    %6 = vector.load %arg7[%c0_6, %c0_7] : memref<32x32xf32, #tpu.memory_space<vmem>>, vector<32x32xf32>
    %c0_8 = arith.constant 0 : index
    %c0_9 = arith.constant 0 : index
    %7 = vector.load %arg8[%c0_8, %c0_9] : memref<32x1xf32, #tpu.memory_space<vmem>>, vector<32x1xf32>
    %c0_10 = arith.constant 0 : index
    %c0_11 = arith.constant 0 : index
    %8 = vector.load %arg9[%c0_10, %c0_11] : memref<32x1xf32, #tpu.memory_space<vmem>>, vector<32x1xf32>
    %c0_12 = arith.constant 0 : index
    %9 = memref.load %arg10[%c0_12] : memref<1xf32, #tpu.memory_space<smem>>
    %c0_13 = arith.constant 0 : index
    %c0_14 = arith.constant 0 : index
    %10 = vector.load %arg13[%c0_13, %c0_14] : memref<32x8xf32, #tpu.memory_space<vmem>>, vector<32x8xf32>
    %c0_i32_15 = arith.constant 0 : i32
    %11 = arith.index_cast %c0_i32_15 : i32 to index
    %c0_16 = arith.constant 0 : index
    %c0_17 = arith.constant 0 : index
    %12 = vector.load %arg2[%11, %c0_16, %c0_17] : memref<8x3x8xf32, #tpu.memory_space<vmem>>, vector<1x3x8xf32>
    %13 = vector.shape_cast %12 : vector<1x3x8xf32> to vector<3x8xf32>
    %14 = vector.extract_strided_slice %3 {offsets = [0, 0], sizes = [32, 1], strides = [1, 1]} : vector<32x3xf32> to vector<32x1xf32>
    %15 = vector.extract_strided_slice %13 {offsets = [0, 0], sizes = [1, 8], strides = [1, 1]} : vector<3x8xf32> to vector<1x8xf32>
    %16 = vector.broadcast %14 : vector<32x1xf32> to vector<32x8xf32>
    %17 = vector.broadcast %15 : vector<1x8xf32> to vector<32x8xf32>
    %18 = arith.mulf %16, %17 : vector<32x8xf32>
    %19 = vector.broadcast %5 : vector<32x1xf32> to vector<32x8xf32>
    %20 = arith.addf %19, %18 : vector<32x8xf32>
    %21 = vector.extract_strided_slice %3 {offsets = [0, 1], sizes = [32, 1], strides = [1, 1]} : vector<32x3xf32> to vector<32x1xf32>
    %22 = vector.extract_strided_slice %13 {offsets = [1, 0], sizes = [1, 8], strides = [1, 1]} : vector<3x8xf32> to vector<1x8xf32>
    %23 = vector.broadcast %21 : vector<32x1xf32> to vector<32x8xf32>
    %24 = vector.broadcast %22 : vector<1x8xf32> to vector<32x8xf32>
    %25 = arith.mulf %23, %24 : vector<32x8xf32>
    %26 = arith.addf %20, %25 : vector<32x8xf32>
    %27 = vector.extract_strided_slice %3 {offsets = [0, 2], sizes = [32, 1], strides = [1, 1]} : vector<32x3xf32> to vector<32x1xf32>
    %28 = vector.extract_strided_slice %13 {offsets = [2, 0], sizes = [1, 8], strides = [1, 1]} : vector<3x8xf32> to vector<1x8xf32>
    %29 = vector.broadcast %27 : vector<32x1xf32> to vector<32x8xf32>
    %30 = vector.broadcast %28 : vector<1x8xf32> to vector<32x8xf32>
    %31 = arith.mulf %29, %30 : vector<32x8xf32>
    %32 = arith.addf %26, %31 : vector<32x8xf32>
    %cst = arith.constant dense<0.000000e+00> : vector<32x8xf32>
    %33 = tpu.matmul %4, %10, %cst {dimension_numbers = #tpu.dot_dimension_numbers<[1], [0], [0], [1], [0, 0, 1, 1], [], []>} : vector<32x32xf32>, vector<32x8xf32>, vector<32x8xf32> -> vector<32x8xf32>
    %34 = arith.addf %32, %33 : vector<32x8xf32>
    %35 = math.tanh %34 : vector<32x8xf32>
    %cst_18 = arith.constant dense<0.000000e+00> : vector<32x8xf32>
    %36 = tpu.matmul %6, %35, %cst_18 {dimension_numbers = #tpu.dot_dimension_numbers<[1], [0], [0], [1], [0, 0, 1, 1], [], []>} : vector<32x32xf32>, vector<32x8xf32>, vector<32x8xf32> -> vector<32x8xf32>
    %37 = vector.broadcast %7 : vector<32x1xf32> to vector<32x8xf32>
    %38 = arith.addf %36, %37 : vector<32x8xf32>
    %39 = arith.negf %38 : vector<32x8xf32>
    %40 = math.exp %39 : vector<32x8xf32>
    %cst_19 = arith.constant 1.000000e+00 : f32
    %41 = vector.broadcast %cst_19 : f32 to vector<32x8xf32>
    %42 = arith.addf %41, %40 : vector<32x8xf32>
    %43 = arith.divf %41, %42 : vector<32x8xf32>
    %44 = arith.mulf %38, %43 : vector<32x8xf32>
    %45 = vector.broadcast %8 : vector<32x1xf32> to vector<32x8xf32>
    %46 = arith.mulf %44, %45 : vector<32x8xf32>
    %cst_20 = arith.constant dense<0.000000e+00> : vector<8xf32>
    %47 = vector.multi_reduction <add>, %46, %cst_20 [0] : vector<32x8xf32> to vector<8xf32>
    %48 = vector.shape_cast %47 : vector<8xf32> to vector<1x8xf32>
    %49 = vector.broadcast %9 : f32 to vector<1x8xf32>
    %50 = arith.addf %48, %49 : vector<1x8xf32>
    %51 = arith.index_cast %c0_i32_15 : i32 to index
    %c0_21 = arith.constant 0 : index
    %52 = vector.load %arg11[%51, %c0_21] : memref<8x8xf32, #tpu.memory_space<vmem>>, vector<1x8xf32>
    tpu.vector_store %arg11[%51, %c0_21], %50 {strides = array<i32>} : memref<8x8xf32, #tpu.memory_space<vmem>>, vector<1x8xf32>,
    %c1_i32 = arith.constant 1 : i32
    %53 = arith.index_cast %c1_i32 : i32 to index
    %c0_22 = arith.constant 0 : index
    %c0_23 = arith.constant 0 : index
    %54 = vector.load %arg2[%53, %c0_22, %c0_23] : memref<8x3x8xf32, #tpu.memory_space<vmem>>, vector<1x3x8xf32>
    %55 = vector.shape_cast %54 : vector<1x3x8xf32> to vector<3x8xf32>
    %56 = vector.extract_strided_slice %3 {offsets = [0, 0], sizes = [32, 1], strides = [1, 1]} : vector<32x3xf32> to vector<32x1xf32>
    %57 = vector.extract_strided_slice %55 {offsets = [0, 0], sizes = [1, 8], strides = [1, 1]} : vector<3x8xf32> to vector<1x8xf32>
    %58 = vector.broadcast %56 : vector<32x1xf32> to vector<32x8xf32>
    %59 = vector.broadcast %57 : vector<1x8xf32> to vector<32x8xf32>
    %60 = arith.mulf %58, %59 : vector<32x8xf32>
    %61 = vector.broadcast %5 : vector<32x1xf32> to vector<32x8xf32>
    %62 = arith.addf %61, %60 : vector<32x8xf32>
    %63 = vector.extract_strided_slice %3 {offsets = [0, 1], sizes = [32, 1], strides = [1, 1]} : vector<32x3xf32> to vector<32x1xf32>
    %64 = vector.extract_strided_slice %55 {offsets = [1, 0], sizes = [1, 8], strides = [1, 1]} : vector<3x8xf32> to vector<1x8xf32>
    %65 = vector.broadcast %63 : vector<32x1xf32> to vector<32x8xf32>
    %66 = vector.broadcast %64 : vector<1x8xf32> to vector<32x8xf32>
    %67 = arith.mulf %65, %66 : vector<32x8xf32>
    %68 = arith.addf %62, %67 : vector<32x8xf32>
    %69 = vector.extract_strided_slice %3 {offsets = [0, 2], sizes = [32, 1], strides = [1, 1]} : vector<32x3xf32> to vector<32x1xf32>
    %70 = vector.extract_strided_slice %55 {offsets = [2, 0], sizes = [1, 8], strides = [1, 1]} : vector<3x8xf32> to vector<1x8xf32>
    %71 = vector.broadcast %69 : vector<32x1xf32> to vector<32x8xf32>
    %72 = vector.broadcast %70 : vector<1x8xf32> to vector<32x8xf32>
    %73 = arith.mulf %71, %72 : vector<32x8xf32>
    %74 = arith.addf %68, %73 : vector<32x8xf32>
    %cst_24 = arith.constant dense<0.000000e+00> : vector<32x8xf32>
    %75 = tpu.matmul %4, %35, %cst_24 {dimension_numbers = #tpu.dot_dimension_numbers<[1], [0], [0], [1], [0, 0, 1, 1], [], []>} : vector<32x32xf32>, vector<32x8xf32>, vector<32x8xf32> -> vector<32x8xf32>
    %76 = arith.addf %74, %75 : vector<32x8xf32>
    %77 = math.tanh %76 : vector<32x8xf32>
    %cst_25 = arith.constant dense<0.000000e+00> : vector<32x8xf32>
    %78 = tpu.matmul %6, %77, %cst_25 {dimension_numbers = #tpu.dot_dimension_numbers<[1], [0], [0], [1], [0, 0, 1, 1], [], []>} : vector<32x32xf32>, vector<32x8xf32>, vector<32x8xf32> -> vector<32x8xf32>
    %79 = vector.broadcast %7 : vector<32x1xf32> to vector<32x8xf32>
    %80 = arith.addf %78, %79 : vector<32x8xf32>
    %81 = arith.negf %80 : vector<32x8xf32>
    %82 = math.exp %81 : vector<32x8xf32>
    %cst_26 = arith.constant 1.000000e+00 : f32
    %83 = vector.broadcast %cst_26 : f32 to vector<32x8xf32>
    %84 = arith.addf %83, %82 : vector<32x8xf32>
    %85 = arith.divf %83, %84 : vector<32x8xf32>
    %86 = arith.mulf %80, %85 : vector<32x8xf32>
    %87 = vector.broadcast %8 : vector<32x1xf32> to vector<32x8xf32>
    %88 = arith.mulf %86, %87 : vector<32x8xf32>
    %cst_27 = arith.constant dense<0.000000e+00> : vector<8xf32>
    %89 = vector.multi_reduction <add>, %88, %cst_27 [0] : vector<32x8xf32> to vector<8xf32>
    %90 = vector.shape_cast %89 : vector<8xf32> to vector<1x8xf32>
    %91 = vector.broadcast %9 : f32 to vector<1x8xf32>
    %92 = arith.addf %90, %91 : vector<1x8xf32>
    %93 = arith.index_cast %c1_i32 : i32 to index
    %c0_28 = arith.constant 0 : index
    %94 = vector.load %arg11[%93, %c0_28] : memref<8x8xf32, #tpu.memory_space<vmem>>, vector<1x8xf32>
    tpu.vector_store %arg11[%93, %c0_28], %92 {strides = array<i32>} : memref<8x8xf32, #tpu.memory_space<vmem>>, vector<1x8xf32>,
    %c2_i32 = arith.constant 2 : i32
    %95 = arith.index_cast %c2_i32 : i32 to index
    %c0_29 = arith.constant 0 : index
    %c0_30 = arith.constant 0 : index
    %96 = vector.load %arg2[%95, %c0_29, %c0_30] : memref<8x3x8xf32, #tpu.memory_space<vmem>>, vector<1x3x8xf32>
    %97 = vector.shape_cast %96 : vector<1x3x8xf32> to vector<3x8xf32>
    %98 = vector.extract_strided_slice %3 {offsets = [0, 0], sizes = [32, 1], strides = [1, 1]} : vector<32x3xf32> to vector<32x1xf32>
    %99 = vector.extract_strided_slice %97 {offsets = [0, 0], sizes = [1, 8], strides = [1, 1]} : vector<3x8xf32> to vector<1x8xf32>
    %100 = vector.broadcast %98 : vector<32x1xf32> to vector<32x8xf32>
    %101 = vector.broadcast %99 : vector<1x8xf32> to vector<32x8xf32>
    %102 = arith.mulf %100, %101 : vector<32x8xf32>
    %103 = vector.broadcast %5 : vector<32x1xf32> to vector<32x8xf32>
    %104 = arith.addf %103, %102 : vector<32x8xf32>
    %105 = vector.extract_strided_slice %3 {offsets = [0, 1], sizes = [32, 1], strides = [1, 1]} : vector<32x3xf32> to vector<32x1xf32>
    %106 = vector.extract_strided_slice %97 {offsets = [1, 0], sizes = [1, 8], strides = [1, 1]} : vector<3x8xf32> to vector<1x8xf32>
    %107 = vector.broadcast %105 : vector<32x1xf32> to vector<32x8xf32>
    %108 = vector.broadcast %106 : vector<1x8xf32> to vector<32x8xf32>
    %109 = arith.mulf %107, %108 : vector<32x8xf32>
    %110 = arith.addf %104, %109 : vector<32x8xf32>
    %111 = vector.extract_strided_slice %3 {offsets = [0, 2], sizes = [32, 1], strides = [1, 1]} : vector<32x3xf32> to vector<32x1xf32>
    %112 = vector.extract_strided_slice %97 {offsets = [2, 0], sizes = [1, 8], strides = [1, 1]} : vector<3x8xf32> to vector<1x8xf32>
    %113 = vector.broadcast %111 : vector<32x1xf32> to vector<32x8xf32>
    %114 = vector.broadcast %112 : vector<1x8xf32> to vector<32x8xf32>
    %115 = arith.mulf %113, %114 : vector<32x8xf32>
    %116 = arith.addf %110, %115 : vector<32x8xf32>
    %cst_31 = arith.constant dense<0.000000e+00> : vector<32x8xf32>
    %117 = tpu.matmul %4, %77, %cst_31 {dimension_numbers = #tpu.dot_dimension_numbers<[1], [0], [0], [1], [0, 0, 1, 1], [], []>} : vector<32x32xf32>, vector<32x8xf32>, vector<32x8xf32> -> vector<32x8xf32>
    %118 = arith.addf %116, %117 : vector<32x8xf32>
    %119 = math.tanh %118 : vector<32x8xf32>
    %cst_32 = arith.constant dense<0.000000e+00> : vector<32x8xf32>
    %120 = tpu.matmul %6, %119, %cst_32 {dimension_numbers = #tpu.dot_dimension_numbers<[1], [0], [0], [1], [0, 0, 1, 1], [], []>} : vector<32x32xf32>, vector<32x8xf32>, vector<32x8xf32> -> vector<32x8xf32>
    %121 = vector.broadcast %7 : vector<32x1xf32> to vector<32x8xf32>
    %122 = arith.addf %120, %121 : vector<32x8xf32>
    %123 = arith.negf %122 : vector<32x8xf32>
    %124 = math.exp %123 : vector<32x8xf32>
    %cst_33 = arith.constant 1.000000e+00 : f32
    %125 = vector.broadcast %cst_33 : f32 to vector<32x8xf32>
    %126 = arith.addf %125, %124 : vector<32x8xf32>
    %127 = arith.divf %125, %126 : vector<32x8xf32>
    %128 = arith.mulf %122, %127 : vector<32x8xf32>
    %129 = vector.broadcast %8 : vector<32x1xf32> to vector<32x8xf32>
    %130 = arith.mulf %128, %129 : vector<32x8xf32>
    %cst_34 = arith.constant dense<0.000000e+00> : vector<8xf32>
    %131 = vector.multi_reduction <add>, %130, %cst_34 [0] : vector<32x8xf32> to vector<8xf32>
    %132 = vector.shape_cast %131 : vector<8xf32> to vector<1x8xf32>
    %133 = vector.broadcast %9 : f32 to vector<1x8xf32>
    %134 = arith.addf %132, %133 : vector<1x8xf32>
    %135 = arith.index_cast %c2_i32 : i32 to index
    %c0_35 = arith.constant 0 : index
    %136 = vector.load %arg11[%135, %c0_35] : memref<8x8xf32, #tpu.memory_space<vmem>>, vector<1x8xf32>
    tpu.vector_store %arg11[%135, %c0_35], %134 {strides = array<i32>} : memref<8x8xf32, #tpu.memory_space<vmem>>, vector<1x8xf32>,
    %c3_i32 = arith.constant 3 : i32
    %137 = arith.index_cast %c3_i32 : i32 to index
    %c0_36 = arith.constant 0 : index
    %c0_37 = arith.constant 0 : index
    %138 = vector.load %arg2[%137, %c0_36, %c0_37] : memref<8x3x8xf32, #tpu.memory_space<vmem>>, vector<1x3x8xf32>
    %139 = vector.shape_cast %138 : vector<1x3x8xf32> to vector<3x8xf32>
    %140 = vector.extract_strided_slice %3 {offsets = [0, 0], sizes = [32, 1], strides = [1, 1]} : vector<32x3xf32> to vector<32x1xf32>
    %141 = vector.extract_strided_slice %139 {offsets = [0, 0], sizes = [1, 8], strides = [1, 1]} : vector<3x8xf32> to vector<1x8xf32>
    %142 = vector.broadcast %140 : vector<32x1xf32> to vector<32x8xf32>
    %143 = vector.broadcast %141 : vector<1x8xf32> to vector<32x8xf32>
    %144 = arith.mulf %142, %143 : vector<32x8xf32>
    %145 = vector.broadcast %5 : vector<32x1xf32> to vector<32x8xf32>
    %146 = arith.addf %145, %144 : vector<32x8xf32>
    %147 = vector.extract_strided_slice %3 {offsets = [0, 1], sizes = [32, 1], strides = [1, 1]} : vector<32x3xf32> to vector<32x1xf32>
    %148 = vector.extract_strided_slice %139 {offsets = [1, 0], sizes = [1, 8], strides = [1, 1]} : vector<3x8xf32> to vector<1x8xf32>
    %149 = vector.broadcast %147 : vector<32x1xf32> to vector<32x8xf32>
    %150 = vector.broadcast %148 : vector<1x8xf32> to vector<32x8xf32>
    %151 = arith.mulf %149, %150 : vector<32x8xf32>
    %152 = arith.addf %146, %151 : vector<32x8xf32>
    %153 = vector.extract_strided_slice %3 {offsets = [0, 2], sizes = [32, 1], strides = [1, 1]} : vector<32x3xf32> to vector<32x1xf32>
    %154 = vector.extract_strided_slice %139 {offsets = [2, 0], sizes = [1, 8], strides = [1, 1]} : vector<3x8xf32> to vector<1x8xf32>
    %155 = vector.broadcast %153 : vector<32x1xf32> to vector<32x8xf32>
    %156 = vector.broadcast %154 : vector<1x8xf32> to vector<32x8xf32>
    %157 = arith.mulf %155, %156 : vector<32x8xf32>
    %158 = arith.addf %152, %157 : vector<32x8xf32>
    %cst_38 = arith.constant dense<0.000000e+00> : vector<32x8xf32>
    %159 = tpu.matmul %4, %119, %cst_38 {dimension_numbers = #tpu.dot_dimension_numbers<[1], [0], [0], [1], [0, 0, 1, 1], [], []>} : vector<32x32xf32>, vector<32x8xf32>, vector<32x8xf32> -> vector<32x8xf32>
    %160 = arith.addf %158, %159 : vector<32x8xf32>
    %161 = math.tanh %160 : vector<32x8xf32>
    %cst_39 = arith.constant dense<0.000000e+00> : vector<32x8xf32>
    %162 = tpu.matmul %6, %161, %cst_39 {dimension_numbers = #tpu.dot_dimension_numbers<[1], [0], [0], [1], [0, 0, 1, 1], [], []>} : vector<32x32xf32>, vector<32x8xf32>, vector<32x8xf32> -> vector<32x8xf32>
    %163 = vector.broadcast %7 : vector<32x1xf32> to vector<32x8xf32>
    %164 = arith.addf %162, %163 : vector<32x8xf32>
    %165 = arith.negf %164 : vector<32x8xf32>
    %166 = math.exp %165 : vector<32x8xf32>
    %cst_40 = arith.constant 1.000000e+00 : f32
    %167 = vector.broadcast %cst_40 : f32 to vector<32x8xf32>
    %168 = arith.addf %167, %166 : vector<32x8xf32>
    %169 = arith.divf %167, %168 : vector<32x8xf32>
    %170 = arith.mulf %164, %169 : vector<32x8xf32>
    %171 = vector.broadcast %8 : vector<32x1xf32> to vector<32x8xf32>
    %172 = arith.mulf %170, %171 : vector<32x8xf32>
    %cst_41 = arith.constant dense<0.000000e+00> : vector<8xf32>
    %173 = vector.multi_reduction <add>, %172, %cst_41 [0] : vector<32x8xf32> to vector<8xf32>
    %174 = vector.shape_cast %173 : vector<8xf32> to vector<1x8xf32>
    %175 = vector.broadcast %9 : f32 to vector<1x8xf32>
    %176 = arith.addf %174, %175 : vector<1x8xf32>
    %177 = arith.index_cast %c3_i32 : i32 to index
    %c0_42 = arith.constant 0 : index
    %178 = vector.load %arg11[%177, %c0_42] : memref<8x8xf32, #tpu.memory_space<vmem>>, vector<1x8xf32>
    tpu.vector_store %arg11[%177, %c0_42], %176 {strides = array<i32>} : memref<8x8xf32, #tpu.memory_space<vmem>>, vector<1x8xf32>,
    %c4_i32 = arith.constant 4 : i32
    %179 = arith.index_cast %c4_i32 : i32 to index
    %c0_43 = arith.constant 0 : index
    %c0_44 = arith.constant 0 : index
    %180 = vector.load %arg2[%179, %c0_43, %c0_44] : memref<8x3x8xf32, #tpu.memory_space<vmem>>, vector<1x3x8xf32>
    %181 = vector.shape_cast %180 : vector<1x3x8xf32> to vector<3x8xf32>
    %182 = vector.extract_strided_slice %3 {offsets = [0, 0], sizes = [32, 1], strides = [1, 1]} : vector<32x3xf32> to vector<32x1xf32>
    %183 = vector.extract_strided_slice %181 {offsets = [0, 0], sizes = [1, 8], strides = [1, 1]} : vector<3x8xf32> to vector<1x8xf32>
    %184 = vector.broadcast %182 : vector<32x1xf32> to vector<32x8xf32>
    %185 = vector.broadcast %183 : vector<1x8xf32> to vector<32x8xf32>
    %186 = arith.mulf %184, %185 : vector<32x8xf32>
    %187 = vector.broadcast %5 : vector<32x1xf32> to vector<32x8xf32>
    %188 = arith.addf %187, %186 : vector<32x8xf32>
    %189 = vector.extract_strided_slice %3 {offsets = [0, 1], sizes = [32, 1], strides = [1, 1]} : vector<32x3xf32> to vector<32x1xf32>
    %190 = vector.extract_strided_slice %181 {offsets = [1, 0], sizes = [1, 8], strides = [1, 1]} : vector<3x8xf32> to vector<1x8xf32>
    %191 = vector.broadcast %189 : vector<32x1xf32> to vector<32x8xf32>
    %192 = vector.broadcast %190 : vector<1x8xf32> to vector<32x8xf32>
    %193 = arith.mulf %191, %192 : vector<32x8xf32>
    %194 = arith.addf %188, %193 : vector<32x8xf32>
    %195 = vector.extract_strided_slice %3 {offsets = [0, 2], sizes = [32, 1], strides = [1, 1]} : vector<32x3xf32> to vector<32x1xf32>
    %196 = vector.extract_strided_slice %181 {offsets = [2, 0], sizes = [1, 8], strides = [1, 1]} : vector<3x8xf32> to vector<1x8xf32>
    %197 = vector.broadcast %195 : vector<32x1xf32> to vector<32x8xf32>
    %198 = vector.broadcast %196 : vector<1x8xf32> to vector<32x8xf32>
    %199 = arith.mulf %197, %198 : vector<32x8xf32>
    %200 = arith.addf %194, %199 : vector<32x8xf32>
    %cst_45 = arith.constant dense<0.000000e+00> : vector<32x8xf32>
    %201 = tpu.matmul %4, %161, %cst_45 {dimension_numbers = #tpu.dot_dimension_numbers<[1], [0], [0], [1], [0, 0, 1, 1], [], []>} : vector<32x32xf32>, vector<32x8xf32>, vector<32x8xf32> -> vector<32x8xf32>
    %202 = arith.addf %200, %201 : vector<32x8xf32>
    %203 = math.tanh %202 : vector<32x8xf32>
    %cst_46 = arith.constant dense<0.000000e+00> : vector<32x8xf32>
    %204 = tpu.matmul %6, %203, %cst_46 {dimension_numbers = #tpu.dot_dimension_numbers<[1], [0], [0], [1], [0, 0, 1, 1], [], []>} : vector<32x32xf32>, vector<32x8xf32>, vector<32x8xf32> -> vector<32x8xf32>
    %205 = vector.broadcast %7 : vector<32x1xf32> to vector<32x8xf32>
    %206 = arith.addf %204, %205 : vector<32x8xf32>
    %207 = arith.negf %206 : vector<32x8xf32>
    %208 = math.exp %207 : vector<32x8xf32>
    %cst_47 = arith.constant 1.000000e+00 : f32
    %209 = vector.broadcast %cst_47 : f32 to vector<32x8xf32>
    %210 = arith.addf %209, %208 : vector<32x8xf32>
    %211 = arith.divf %209, %210 : vector<32x8xf32>
    %212 = arith.mulf %206, %211 : vector<32x8xf32>
    %213 = vector.broadcast %8 : vector<32x1xf32> to vector<32x8xf32>
    %214 = arith.mulf %212, %213 : vector<32x8xf32>
    %cst_48 = arith.constant dense<0.000000e+00> : vector<8xf32>
    %215 = vector.multi_reduction <add>, %214, %cst_48 [0] : vector<32x8xf32> to vector<8xf32>
    %216 = vector.shape_cast %215 : vector<8xf32> to vector<1x8xf32>
    %217 = vector.broadcast %9 : f32 to vector<1x8xf32>
    %218 = arith.addf %216, %217 : vector<1x8xf32>
    %219 = arith.index_cast %c4_i32 : i32 to index
    %c0_49 = arith.constant 0 : index
    %220 = vector.load %arg11[%219, %c0_49] : memref<8x8xf32, #tpu.memory_space<vmem>>, vector<1x8xf32>
    tpu.vector_store %arg11[%219, %c0_49], %218 {strides = array<i32>} : memref<8x8xf32, #tpu.memory_space<vmem>>, vector<1x8xf32>,
    %c5_i32 = arith.constant 5 : i32
    %221 = arith.index_cast %c5_i32 : i32 to index
    %c0_50 = arith.constant 0 : index
    %c0_51 = arith.constant 0 : index
    %222 = vector.load %arg2[%221, %c0_50, %c0_51] : memref<8x3x8xf32, #tpu.memory_space<vmem>>, vector<1x3x8xf32>
    %223 = vector.shape_cast %222 : vector<1x3x8xf32> to vector<3x8xf32>
    %224 = vector.extract_strided_slice %3 {offsets = [0, 0], sizes = [32, 1], strides = [1, 1]} : vector<32x3xf32> to vector<32x1xf32>
    %225 = vector.extract_strided_slice %223 {offsets = [0, 0], sizes = [1, 8], strides = [1, 1]} : vector<3x8xf32> to vector<1x8xf32>
    %226 = vector.broadcast %224 : vector<32x1xf32> to vector<32x8xf32>
    %227 = vector.broadcast %225 : vector<1x8xf32> to vector<32x8xf32>
    %228 = arith.mulf %226, %227 : vector<32x8xf32>
    %229 = vector.broadcast %5 : vector<32x1xf32> to vector<32x8xf32>
    %230 = arith.addf %229, %228 : vector<32x8xf32>
    %231 = vector.extract_strided_slice %3 {offsets = [0, 1], sizes = [32, 1], strides = [1, 1]} : vector<32x3xf32> to vector<32x1xf32>
    %232 = vector.extract_strided_slice %223 {offsets = [1, 0], sizes = [1, 8], strides = [1, 1]} : vector<3x8xf32> to vector<1x8xf32>
    %233 = vector.broadcast %231 : vector<32x1xf32> to vector<32x8xf32>
    %234 = vector.broadcast %232 : vector<1x8xf32> to vector<32x8xf32>
    %235 = arith.mulf %233, %234 : vector<32x8xf32>
    %236 = arith.addf %230, %235 : vector<32x8xf32>
    %237 = vector.extract_strided_slice %3 {offsets = [0, 2], sizes = [32, 1], strides = [1, 1]} : vector<32x3xf32> to vector<32x1xf32>
    %238 = vector.extract_strided_slice %223 {offsets = [2, 0], sizes = [1, 8], strides = [1, 1]} : vector<3x8xf32> to vector<1x8xf32>
    %239 = vector.broadcast %237 : vector<32x1xf32> to vector<32x8xf32>
    %240 = vector.broadcast %238 : vector<1x8xf32> to vector<32x8xf32>
    %241 = arith.mulf %239, %240 : vector<32x8xf32>
    %242 = arith.addf %236, %241 : vector<32x8xf32>
    %cst_52 = arith.constant dense<0.000000e+00> : vector<32x8xf32>
    %243 = tpu.matmul %4, %203, %cst_52 {dimension_numbers = #tpu.dot_dimension_numbers<[1], [0], [0], [1], [0, 0, 1, 1], [], []>} : vector<32x32xf32>, vector<32x8xf32>, vector<32x8xf32> -> vector<32x8xf32>
    %244 = arith.addf %242, %243 : vector<32x8xf32>
    %245 = math.tanh %244 : vector<32x8xf32>
    %cst_53 = arith.constant dense<0.000000e+00> : vector<32x8xf32>
    %246 = tpu.matmul %6, %245, %cst_53 {dimension_numbers = #tpu.dot_dimension_numbers<[1], [0], [0], [1], [0, 0, 1, 1], [], []>} : vector<32x32xf32>, vector<32x8xf32>, vector<32x8xf32> -> vector<32x8xf32>
    %247 = vector.broadcast %7 : vector<32x1xf32> to vector<32x8xf32>
    %248 = arith.addf %246, %247 : vector<32x8xf32>
    %249 = arith.negf %248 : vector<32x8xf32>
    %250 = math.exp %249 : vector<32x8xf32>
    %cst_54 = arith.constant 1.000000e+00 : f32
    %251 = vector.broadcast %cst_54 : f32 to vector<32x8xf32>
    %252 = arith.addf %251, %250 : vector<32x8xf32>
    %253 = arith.divf %251, %252 : vector<32x8xf32>
    %254 = arith.mulf %248, %253 : vector<32x8xf32>
    %255 = vector.broadcast %8 : vector<32x1xf32> to vector<32x8xf32>
    %256 = arith.mulf %254, %255 : vector<32x8xf32>
    %cst_55 = arith.constant dense<0.000000e+00> : vector<8xf32>
    %257 = vector.multi_reduction <add>, %256, %cst_55 [0] : vector<32x8xf32> to vector<8xf32>
    %258 = vector.shape_cast %257 : vector<8xf32> to vector<1x8xf32>
    %259 = vector.broadcast %9 : f32 to vector<1x8xf32>
    %260 = arith.addf %258, %259 : vector<1x8xf32>
    %261 = arith.index_cast %c5_i32 : i32 to index
    %c0_56 = arith.constant 0 : index
    %262 = vector.load %arg11[%261, %c0_56] : memref<8x8xf32, #tpu.memory_space<vmem>>, vector<1x8xf32>
    tpu.vector_store %arg11[%261, %c0_56], %260 {strides = array<i32>} : memref<8x8xf32, #tpu.memory_space<vmem>>, vector<1x8xf32>,
    %c6_i32 = arith.constant 6 : i32
    %263 = arith.index_cast %c6_i32 : i32 to index
    %c0_57 = arith.constant 0 : index
    %c0_58 = arith.constant 0 : index
    %264 = vector.load %arg2[%263, %c0_57, %c0_58] : memref<8x3x8xf32, #tpu.memory_space<vmem>>, vector<1x3x8xf32>
    %265 = vector.shape_cast %264 : vector<1x3x8xf32> to vector<3x8xf32>
    %266 = vector.extract_strided_slice %3 {offsets = [0, 0], sizes = [32, 1], strides = [1, 1]} : vector<32x3xf32> to vector<32x1xf32>
    %267 = vector.extract_strided_slice %265 {offsets = [0, 0], sizes = [1, 8], strides = [1, 1]} : vector<3x8xf32> to vector<1x8xf32>
    %268 = vector.broadcast %266 : vector<32x1xf32> to vector<32x8xf32>
    %269 = vector.broadcast %267 : vector<1x8xf32> to vector<32x8xf32>
    %270 = arith.mulf %268, %269 : vector<32x8xf32>
    %271 = vector.broadcast %5 : vector<32x1xf32> to vector<32x8xf32>
    %272 = arith.addf %271, %270 : vector<32x8xf32>
    %273 = vector.extract_strided_slice %3 {offsets = [0, 1], sizes = [32, 1], strides = [1, 1]} : vector<32x3xf32> to vector<32x1xf32>
    %274 = vector.extract_strided_slice %265 {offsets = [1, 0], sizes = [1, 8], strides = [1, 1]} : vector<3x8xf32> to vector<1x8xf32>
    %275 = vector.broadcast %273 : vector<32x1xf32> to vector<32x8xf32>
    %276 = vector.broadcast %274 : vector<1x8xf32> to vector<32x8xf32>
    %277 = arith.mulf %275, %276 : vector<32x8xf32>
    %278 = arith.addf %272, %277 : vector<32x8xf32>
    %279 = vector.extract_strided_slice %3 {offsets = [0, 2], sizes = [32, 1], strides = [1, 1]} : vector<32x3xf32> to vector<32x1xf32>
    %280 = vector.extract_strided_slice %265 {offsets = [2, 0], sizes = [1, 8], strides = [1, 1]} : vector<3x8xf32> to vector<1x8xf32>
    %281 = vector.broadcast %279 : vector<32x1xf32> to vector<32x8xf32>
    %282 = vector.broadcast %280 : vector<1x8xf32> to vector<32x8xf32>
    %283 = arith.mulf %281, %282 : vector<32x8xf32>
    %284 = arith.addf %278, %283 : vector<32x8xf32>
    %cst_59 = arith.constant dense<0.000000e+00> : vector<32x8xf32>
    %285 = tpu.matmul %4, %245, %cst_59 {dimension_numbers = #tpu.dot_dimension_numbers<[1], [0], [0], [1], [0, 0, 1, 1], [], []>} : vector<32x32xf32>, vector<32x8xf32>, vector<32x8xf32> -> vector<32x8xf32>
    %286 = arith.addf %284, %285 : vector<32x8xf32>
    %287 = math.tanh %286 : vector<32x8xf32>
    %cst_60 = arith.constant dense<0.000000e+00> : vector<32x8xf32>
    %288 = tpu.matmul %6, %287, %cst_60 {dimension_numbers = #tpu.dot_dimension_numbers<[1], [0], [0], [1], [0, 0, 1, 1], [], []>} : vector<32x32xf32>, vector<32x8xf32>, vector<32x8xf32> -> vector<32x8xf32>
    %289 = vector.broadcast %7 : vector<32x1xf32> to vector<32x8xf32>
    %290 = arith.addf %288, %289 : vector<32x8xf32>
    %291 = arith.negf %290 : vector<32x8xf32>
    %292 = math.exp %291 : vector<32x8xf32>
    %cst_61 = arith.constant 1.000000e+00 : f32
    %293 = vector.broadcast %cst_61 : f32 to vector<32x8xf32>
    %294 = arith.addf %293, %292 : vector<32x8xf32>
    %295 = arith.divf %293, %294 : vector<32x8xf32>
    %296 = arith.mulf %290, %295 : vector<32x8xf32>
    %297 = vector.broadcast %8 : vector<32x1xf32> to vector<32x8xf32>
    %298 = arith.mulf %296, %297 : vector<32x8xf32>
    %cst_62 = arith.constant dense<0.000000e+00> : vector<8xf32>
    %299 = vector.multi_reduction <add>, %298, %cst_62 [0] : vector<32x8xf32> to vector<8xf32>
    %300 = vector.shape_cast %299 : vector<8xf32> to vector<1x8xf32>
    %301 = vector.broadcast %9 : f32 to vector<1x8xf32>
    %302 = arith.addf %300, %301 : vector<1x8xf32>
    %303 = arith.index_cast %c6_i32 : i32 to index
    %c0_63 = arith.constant 0 : index
    %304 = vector.load %arg11[%303, %c0_63] : memref<8x8xf32, #tpu.memory_space<vmem>>, vector<1x8xf32>
    tpu.vector_store %arg11[%303, %c0_63], %302 {strides = array<i32>} : memref<8x8xf32, #tpu.memory_space<vmem>>, vector<1x8xf32>,
    %c7_i32 = arith.constant 7 : i32
    %305 = arith.index_cast %c7_i32 : i32 to index
    %c0_64 = arith.constant 0 : index
    %c0_65 = arith.constant 0 : index
    %306 = vector.load %arg2[%305, %c0_64, %c0_65] : memref<8x3x8xf32, #tpu.memory_space<vmem>>, vector<1x3x8xf32>
    %307 = vector.shape_cast %306 : vector<1x3x8xf32> to vector<3x8xf32>
    %308 = vector.extract_strided_slice %3 {offsets = [0, 0], sizes = [32, 1], strides = [1, 1]} : vector<32x3xf32> to vector<32x1xf32>
    %309 = vector.extract_strided_slice %307 {offsets = [0, 0], sizes = [1, 8], strides = [1, 1]} : vector<3x8xf32> to vector<1x8xf32>
    %310 = vector.broadcast %308 : vector<32x1xf32> to vector<32x8xf32>
    %311 = vector.broadcast %309 : vector<1x8xf32> to vector<32x8xf32>
    %312 = arith.mulf %310, %311 : vector<32x8xf32>
    %313 = vector.broadcast %5 : vector<32x1xf32> to vector<32x8xf32>
    %314 = arith.addf %313, %312 : vector<32x8xf32>
    %315 = vector.extract_strided_slice %3 {offsets = [0, 1], sizes = [32, 1], strides = [1, 1]} : vector<32x3xf32> to vector<32x1xf32>
    %316 = vector.extract_strided_slice %307 {offsets = [1, 0], sizes = [1, 8], strides = [1, 1]} : vector<3x8xf32> to vector<1x8xf32>
    %317 = vector.broadcast %315 : vector<32x1xf32> to vector<32x8xf32>
    %318 = vector.broadcast %316 : vector<1x8xf32> to vector<32x8xf32>
    %319 = arith.mulf %317, %318 : vector<32x8xf32>
    %320 = arith.addf %314, %319 : vector<32x8xf32>
    %321 = vector.extract_strided_slice %3 {offsets = [0, 2], sizes = [32, 1], strides = [1, 1]} : vector<32x3xf32> to vector<32x1xf32>
    %322 = vector.extract_strided_slice %307 {offsets = [2, 0], sizes = [1, 8], strides = [1, 1]} : vector<3x8xf32> to vector<1x8xf32>
    %323 = vector.broadcast %321 : vector<32x1xf32> to vector<32x8xf32>
    %324 = vector.broadcast %322 : vector<1x8xf32> to vector<32x8xf32>
    %325 = arith.mulf %323, %324 : vector<32x8xf32>
    %326 = arith.addf %320, %325 : vector<32x8xf32>
    %cst_66 = arith.constant dense<0.000000e+00> : vector<32x8xf32>
    %327 = tpu.matmul %4, %287, %cst_66 {dimension_numbers = #tpu.dot_dimension_numbers<[1], [0], [0], [1], [0, 0, 1, 1], [], []>} : vector<32x32xf32>, vector<32x8xf32>, vector<32x8xf32> -> vector<32x8xf32>
    %328 = arith.addf %326, %327 : vector<32x8xf32>
    %329 = math.tanh %328 : vector<32x8xf32>
    %cst_67 = arith.constant dense<0.000000e+00> : vector<32x8xf32>
    %330 = tpu.matmul %6, %329, %cst_67 {dimension_numbers = #tpu.dot_dimension_numbers<[1], [0], [0], [1], [0, 0, 1, 1], [], []>} : vector<32x32xf32>, vector<32x8xf32>, vector<32x8xf32> -> vector<32x8xf32>
    %331 = vector.broadcast %7 : vector<32x1xf32> to vector<32x8xf32>
    %332 = arith.addf %330, %331 : vector<32x8xf32>
    %333 = arith.negf %332 : vector<32x8xf32>
    %334 = math.exp %333 : vector<32x8xf32>
    %cst_68 = arith.constant 1.000000e+00 : f32
    %335 = vector.broadcast %cst_68 : f32 to vector<32x8xf32>
    %336 = arith.addf %335, %334 : vector<32x8xf32>
    %337 = arith.divf %335, %336 : vector<32x8xf32>
    %338 = arith.mulf %332, %337 : vector<32x8xf32>
    %339 = vector.broadcast %8 : vector<32x1xf32> to vector<32x8xf32>
    %340 = arith.mulf %338, %339 : vector<32x8xf32>
    %cst_69 = arith.constant dense<0.000000e+00> : vector<8xf32>
    %341 = vector.multi_reduction <add>, %340, %cst_69 [0] : vector<32x8xf32> to vector<8xf32>
    %342 = vector.shape_cast %341 : vector<8xf32> to vector<1x8xf32>
    %343 = vector.broadcast %9 : f32 to vector<1x8xf32>
    %344 = arith.addf %342, %343 : vector<1x8xf32>
    %345 = arith.index_cast %c7_i32 : i32 to index
    %c0_70 = arith.constant 0 : index
    %346 = vector.load %arg11[%345, %c0_70] : memref<8x8xf32, #tpu.memory_space<vmem>>, vector<1x8xf32>
    tpu.vector_store %arg11[%345, %c0_70], %344 {strides = array<i32>} : memref<8x8xf32, #tpu.memory_space<vmem>>, vector<1x8xf32>,
    %c8_i32 = arith.constant 8 : i32
    %c0_71 = arith.constant 0 : index
    %c0_72 = arith.constant 0 : index
    %347 = vector.load %arg13[%c0_71, %c0_72] : memref<32x8xf32, #tpu.memory_space<vmem>>, vector<32x8xf32>
    tpu.vector_store %arg13[%c0_71, %c0_72], %329 {strides = array<i32>} : memref<32x8xf32, #tpu.memory_space<vmem>>, vector<32x8xf32>,
    %c0_73 = arith.constant 0 : index
    %c0_74 = arith.constant 0 : index
    %348 = vector.load %arg12[%c0_73, %c0_74] : memref<32x8xf32, #tpu.memory_space<vmem>>, vector<32x8xf32>
    tpu.vector_store %arg12[%c0_73, %c0_74], %329 {strides = array<i32>} : memref<32x8xf32, #tpu.memory_space<vmem>>, vector<32x8xf32>,
    return
  }
  func.func @transform_0(%arg0: i32, %arg1: i32) -> (i32, i32, i32) {
    %c0_i32 = arith.constant 0 : i32
    %c0_i32_0 = arith.constant 0 : i32
    return %arg1, %c0_i32, %arg0 : i32, i32, i32
  }
  func.func @transform_1(%arg0: i32, %arg1: i32) -> (i32, i32) {
    %c0_i32 = arith.constant 0 : i32
    %c0_i32_0 = arith.constant 0 : i32
    return %c0_i32, %arg0 : i32, i32
  }
  func.func @transform_2(%arg0: i32, %arg1: i32) -> (i32, i32) {
    %c0_i32 = arith.constant 0 : i32
    %c0_i32_0 = arith.constant 0 : i32
    %c0_i32_1 = arith.constant 0 : i32
    return %c0_i32, %c0_i32_0 : i32, i32
  }
  func.func @transform_3(%arg0: i32, %arg1: i32) -> (i32, i32) {
    %c0_i32 = arith.constant 0 : i32
    %c0_i32_0 = arith.constant 0 : i32
    %c0_i32_1 = arith.constant 0 : i32
    return %c0_i32, %c0_i32_0 : i32, i32
  }
  func.func @transform_4(%arg0: i32, %arg1: i32) -> (i32, i32) {
    %c0_i32 = arith.constant 0 : i32
    %c0_i32_0 = arith.constant 0 : i32
    %c0_i32_1 = arith.constant 0 : i32
    return %c0_i32, %c0_i32_0 : i32, i32
  }
  func.func @transform_5(%arg0: i32, %arg1: i32) -> (i32, i32) {
    %c0_i32 = arith.constant 0 : i32
    %c0_i32_0 = arith.constant 0 : i32
    %c0_i32_1 = arith.constant 0 : i32
    return %c0_i32, %c0_i32_0 : i32, i32
  }
  func.func @transform_6(%arg0: i32, %arg1: i32) -> (i32, i32) {
    %c0_i32 = arith.constant 0 : i32
    %c0_i32_0 = arith.constant 0 : i32
    %c0_i32_1 = arith.constant 0 : i32
    return %c0_i32, %c0_i32_0 : i32, i32
  }
  func.func @transform_7(%arg0: i32, %arg1: i32) -> (i32, i32) {
    %c0_i32 = arith.constant 0 : i32
    %c0_i32_0 = arith.constant 0 : i32
    %c0_i32_1 = arith.constant 0 : i32
    return %c0_i32, %c0_i32_0 : i32, i32
  }
  func.func @transform_8(%arg0: i32, %arg1: i32) -> i32 {
    %c0_i32 = arith.constant 0 : i32
    %c0_i32_0 = arith.constant 0 : i32
    return %c0_i32 : i32
  }
  func.func @transform_9(%arg0: i32, %arg1: i32) -> (i32, i32) {
    %c0_i32 = arith.constant 0 : i32
    return %arg1, %arg0 : i32, i32
  }
  func.func @transform_10(%arg0: i32, %arg1: i32) -> (i32, i32) {
    %c0_i32 = arith.constant 0 : i32
    %c0_i32_0 = arith.constant 0 : i32
    return %c0_i32, %arg0 : i32, i32
  }
}

</mosaic_0001>

<llo_original>
// kernel: tpu_custom_call.1
$region0: #{tpu_custom_call.1}
  #allocation0 [shape = 'u32[]', space=smem, size = 0x4, offset = 0x4, fixed_abs, tag = 'smem constant byte address 0x4 - core index']
  #allocation1 [shape = 'u32[144,128]{1,0:T(1,128)}', space=vmem, size = 0x12000, scoped, tag = 'internal scratch']
  #allocation2 [shape = 'f32[32,8]{1,0:T(8,128)}', space=vmem, size = 0x4000, scoped, tag = 'scratch operand']
  #allocation3 [shape = 'f32[1]{0:T(128)S(6)}', space=smem, size = 0x200, scoped, tag = 'scoped memory for tpu_custom_call.1']
  %s0 = inlined_call_operand.vmem [shape: f32[8,3,8], index: 0, kind: input, shape index: {}]
  %s1 = inlined_call_operand.vmem [shape: f32[32,8], index: 1, kind: input, shape index: {}]
  %s2 = inlined_call_operand.vmem [shape: f32[32,3], index: 2, kind: input, shape index: {}]
  %s3 = inlined_call_operand.vmem [shape: f32[32,32], index: 3, kind: input, shape index: {}]
  %s4 = inlined_call_operand.vmem [shape: f32[32,1], index: 4, kind: input, shape index: {}]
  %s5 = inlined_call_operand.vmem [shape: f32[32,32], index: 5, kind: input, shape index: {}]
  %s6 = inlined_call_operand.vmem [shape: f32[32,1], index: 6, kind: input, shape index: {}]
  %s7 = inlined_call_operand.vmem [shape: f32[32,1], index: 7, kind: input, shape index: {}]
  %s8 = inlined_call_operand.<no memory space> [shape: f32[1], index: 8, kind: input, shape index: {}]
  %s9 = inlined_call_operand.hbm [shape: f32[8,8], index: 9, kind: output, shape index: {0}]
  %s10 = inlined_call_operand.vmem [shape: f32[32,8], index: 10, kind: output, shape index: {1}]
  %11 = xla_tuple %s9, %s10
  %s12 = sld [smem:[#allocation0]]
  $region58: #{tpu_custom_call.1} parent=0
    _
  %s14 = ssub.s32 1, %s12
  %s15 = scalar_select 0, %s14, %s12
  %16 = sst [smem:[#allocation3]] %s8
  $region1: #{tpu_custom_call.1} parent=0
    #allocation4 [shape = 'u8[4096]{0}', space=vmem, size = 0x1000, scoped, tag = 'output window, operand 0, single buffered']
    #allocation5 [shape = 's32[1]{0}', space=sflag, size = 0x4, scoped, tag = 'scoped memory for tpu_custom_call.1']
    %17 = vsyncpa [#allocation5], 0
    // Predicated region
    $region2: #{tpu_custom_call.1} parent=1 // pred_check
      _
    $region3: #{tpu_custom_call.1} parent=1 // pred_check_branch
      %19 = sbr.rel (0) target = $region5
    $region4: #{tpu_custom_call.1} parent=1 // pred_region
      _
    $region5: #{tpu_custom_call.1} parent=1 // pred_fallthru
      _
    // Predicated region
    $region6: #{tpu_custom_call.1} parent=1 // pred_check
      _
    $region7: #{tpu_custom_call.1} parent=1 // pred_check_branch
      %21 = sbr.rel (0) target = $region9
    $region8: #{tpu_custom_call.1} parent=1 // pred_region
      _
    $region9: #{tpu_custom_call.1} parent=1 // pred_fallthru
      _
    // Predicated region
    $region10: #{tpu_custom_call.1} parent=1 // pred_check
      _
    $region11: #{tpu_custom_call.1} parent=1 // pred_check_branch
      %23 = sbr.rel (0) target = $region13
    $region12: #{tpu_custom_call.1} parent=1 // pred_region
      _
    $region13: #{tpu_custom_call.1} parent=1 // pred_fallthru
      _
    // Predicated region
    $region14: #{tpu_custom_call.1} parent=1 // pred_check
      _
    $region15: #{tpu_custom_call.1} parent=1 // pred_check_branch
      %25 = sbr.rel (0) target = $region17
    $region16: #{tpu_custom_call.1} parent=1 // pred_region
      _
    $region17: #{tpu_custom_call.1} parent=1 // pred_fallthru
      _
    // Predicated region
    $region18: #{tpu_custom_call.1} parent=1 // pred_check
      _
    $region19: #{tpu_custom_call.1} parent=1 // pred_check_branch
      %27 = sbr.rel (0) target = $region21
    $region20: #{tpu_custom_call.1} parent=1 // pred_region
      _
    $region21: #{tpu_custom_call.1} parent=1 // pred_fallthru
      _
    // Predicated region
    $region22: #{tpu_custom_call.1} parent=1 // pred_check
      _
    $region23: #{tpu_custom_call.1} parent=1 // pred_check_branch
      %29 = sbr.rel (0) target = $region25
    $region24: #{tpu_custom_call.1} parent=1 // pred_region
      _
    $region25: #{tpu_custom_call.1} parent=1 // pred_fallthru
      _
    // Predicated region
    $region26: #{tpu_custom_call.1} parent=1 // pred_check
      _
    $region27: #{tpu_custom_call.1} parent=1 // pred_check_branch
      %31 = sbr.rel (0) target = $region29
    $region28: #{tpu_custom_call.1} parent=1 // pred_region
      _
    $region29: #{tpu_custom_call.1} parent=1 // pred_fallthru
      _
    // Predicated region
    $region30: #{tpu_custom_call.1} parent=1 // pred_check
      _
    $region31: #{tpu_custom_call.1} parent=1 // pred_check_branch
      %33 = sbr.rel (0) target = $region33
    $region32: #{tpu_custom_call.1} parent=1 // pred_region
      _
    $region33: #{tpu_custom_call.1} parent=1 // pred_fallthru
      _
    // Predicated region
    $region34: #{tpu_custom_call.1} parent=1 // pred_check
      _
    $region35: #{tpu_custom_call.1} parent=1 // pred_check_branch
      %35 = sbr.rel (0) target = $region37
    $region36: #{tpu_custom_call.1} parent=1 // pred_region
      _
    $region37: #{tpu_custom_call.1} parent=1 // pred_fallthru
      _
    %p36 = scmp.eq.s32.totalorder 0, 0
    // Predicated region
    $region38: #{tpu_custom_call.1} parent=1 // pred_check
      %p37 = pneg %p36
    $region39: #{tpu_custom_call.1} parent=1 // pred_check_branch
      %39 = sbr.rel (%p37) target = $region41
    $region40: #{tpu_custom_call.1} parent=1 // pred_region
      %v40 = vld [vmem:[%s1] sm:$0xff]
      %v41 = vld [vmem:[%s1 + $0x8] sm:$0xff]
      %v42 = vld [vmem:[%s1 + $0x10] sm:$0xff]
      %v43 = vld [vmem:[%s1 + $0x18] sm:$0xff]
      %vm44 = vcmask 64512
      %45 = vst.msk [vmem:[#allocation2] sm:$0xff] %vm44, %v40
      %46 = vst.msk [vmem:[#allocation2 + $0x8] sm:$0xff] %vm44, %v41
      %47 = vst.msk [vmem:[#allocation2 + $0x10] sm:$0xff] %vm44, %v42
      %48 = vst.msk [vmem:[#allocation2 + $0x18] sm:$0xff] %vm44, %v43
    $region41: #{tpu_custom_call.1} parent=1 // pred_fallthru
      _
    %v49 = vld [vmem:[%s2] sm:$0xff]
    %v50 = vld [vmem:[%s2 + $0x8] sm:$0xff]
    %v51 = vld [vmem:[%s2 + $0x10] sm:$0xff]
    %v52 = vld [vmem:[%s2 + $0x18] sm:$0xff]
    %v53 = vld [vmem:[%s3] sm:$0xff]
    %v54 = vld [vmem:[%s3 + $0x8] sm:$0xff]
    %v55 = vld [vmem:[%s3 + $0x10] sm:$0xff]
    %v56 = vld [vmem:[%s3 + $0x18] sm:$0xff]
    %v57 = vld [vmem:[%s4] sm:$0xff]
    %v58 = vld [vmem:[%s4 + $0x8] sm:$0xff]
    %v59 = vld [vmem:[%s4 + $0x10] sm:$0xff]
    %v60 = vld [vmem:[%s4 + $0x18] sm:$0xff]
    %v61 = vld [vmem:[%s5] sm:$0xff]
    %v62 = vld [vmem:[%s5 + $0x8] sm:$0xff]
    %v63 = vld [vmem:[%s5 + $0x10] sm:$0xff]
    %v64 = vld [vmem:[%s5 + $0x18] sm:$0xff]
    %v65 = vld [vmem:[%s6] sm:$0xff]
    %v66 = vld [vmem:[%s6 + $0x8] sm:$0xff]
    %v67 = vld [vmem:[%s6 + $0x10] sm:$0xff]
    %v68 = vld [vmem:[%s6 + $0x18] sm:$0xff]
    %v69 = vld [vmem:[%s7] sm:$0xff]
    %v70 = vld [vmem:[%s7 + $0x8] sm:$0xff]
    %v71 = vld [vmem:[%s7 + $0x10] sm:$0xff]
    %v72 = vld [vmem:[%s7 + $0x18] sm:$0xff]
    %s73 = sld [smem:[#allocation3]]
    %v74 = vld [vmem:[#allocation2] sm:$0xff]
    %v75 = vld [vmem:[#allocation2 + $0x8] sm:$0xff]
    %v76 = vld [vmem:[#allocation2 + $0x10] sm:$0xff]
    %v77 = vld [vmem:[#allocation2 + $0x18] sm:$0xff]
    %v78 = vld [vmem:[%s0] sm:$0x7]
    %80 = vset.pattern.permute.xlu0 0
    %81 = vperm.xlu0 %80, %v49
    %v82 = vpop.permute.xlu0 %81
    %85 = vset.pattern.permute.xlu0 0
    %86 = vperm.xlu0 %85, %v50
    %v87 = vpop.permute.xlu0 %86
    %90 = vset.pattern.permute.xlu0 0
    %91 = vperm.xlu0 %90, %v51
    %v92 = vpop.permute.xlu0 %91
    %95 = vset.pattern.permute.xlu0 0
    %96 = vperm.xlu0 %95, %v52
    %v97 = vpop.permute.xlu0 %96
    %v99 = vlaneseq
    %v100 = vshrl.u32 %v99, 7
    %v101 = vsub.s32 0, %v100
    %v102 = vrot.slane %v78, %v101
    %v103 = vmul.f32 %v82, %v102
    %v104 = vmul.f32 %v87, %v102
    %v105 = vmul.f32 %v92, %v102
    %v106 = vmul.f32 %v97, %v102
    %108 = vset.pattern.permute.xlu0 0
    %109 = vperm.xlu0 %108, %v57
    %v110 = vpop.permute.xlu0 %109
    %113 = vset.pattern.permute.xlu0 0
    %114 = vperm.xlu0 %113, %v58
    %v115 = vpop.permute.xlu0 %114
    %118 = vset.pattern.permute.xlu0 0
    %119 = vperm.xlu0 %118, %v59
    %v120 = vpop.permute.xlu0 %119
    %123 = vset.pattern.permute.xlu0 0
    %124 = vperm.xlu0 %123, %v60
    %v125 = vpop.permute.xlu0 %124
    %v127 = vadd.f32 %v110, %v103
    %v128 = vadd.f32 %v115, %v104
    %v129 = vadd.f32 %v120, %v105
    %v130 = vadd.f32 %v125, %v106
    %131 = vset.pattern.permute.xlu0 1
    %132 = vperm.xlu0 %131, %v49
    %v133 = vpop.permute.xlu0 %132
    %135 = vset.pattern.permute.xlu0 1
    %136 = vperm.xlu0 %135, %v50
    %v137 = vpop.permute.xlu0 %136
    %139 = vset.pattern.permute.xlu0 1
    %140 = vperm.xlu0 %139, %v51
    %v141 = vpop.permute.xlu0 %140
    %143 = vset.pattern.permute.xlu0 1
    %144 = vperm.xlu0 %143, %v52
    %v145 = vpop.permute.xlu0 %144
    %v147 = vlaneseq
    %v148 = vshrl.u32 %v147, 7
    %v149 = vsub.s32 1, %v148
    %v150 = vrot.slane %v78, %v149
    %v151 = vmul.f32 %v133, %v150
    %v152 = vmul.f32 %v137, %v150
    %v153 = vmul.f32 %v141, %v150
    %v154 = vmul.f32 %v145, %v150
    %v155 = vadd.f32 %v127, %v151
    %v156 = vadd.f32 %v128, %v152
    %v157 = vadd.f32 %v129, %v153
    %v158 = vadd.f32 %v130, %v154
    %159 = vset.pattern.permute.xlu0 2
    %160 = vperm.xlu0 %159, %v49
    %v161 = vpop.permute.xlu0 %160
    %163 = vset.pattern.permute.xlu0 2
    %164 = vperm.xlu0 %163, %v50
    %v165 = vpop.permute.xlu0 %164
    %167 = vset.pattern.permute.xlu0 2
    %168 = vperm.xlu0 %167, %v51
    %v169 = vpop.permute.xlu0 %168
    %171 = vset.pattern.permute.xlu0 2
    %172 = vperm.xlu0 %171, %v52
    %v173 = vpop.permute.xlu0 %172
    %v175 = vlaneseq
    %v176 = vshrl.u32 %v175, 7
    %v177 = vsub.s32 2, %v176
    %v178 = vrot.slane %v78, %v177
    %v179 = vmul.f32 %v161, %v178
    %v180 = vmul.f32 %v165, %v178
    %v181 = vmul.f32 %v169, %v178
    %v182 = vmul.f32 %v173, %v178
    %v183 = vadd.f32 %v155, %v179
    %v184 = vadd.f32 %v156, %v180
    %v185 = vadd.f32 %v157, %v181
    %v186 = vadd.f32 %v158, %v182
    %vm187 = vcmask 261120
    %v189 = vsel %vm187, %v53, 0
    %v192 = vsel %vm187, %v54, 0
    %v195 = vsel %vm187, %v55, 0
    %v198 = vsel %vm187, %v56, 0
    %200 = vmatprep.subr.mxu0 0.0
    %201 = vmatpush1.msra.mxu0 0.0
    %202 = vmatprep.subr.mxu0 0.0
    %203 = vmatpush1.msra.mxu0 0.0
    %204 = vmatprep.subr.mxu0 0.0
    %205 = vmatpush1.msra.mxu0 0.0
    %206 = vmatprep.subr.mxu0 0.0
    %207 = vmatpush1.msra.mxu0 0.0
    %208 = vmatprep.subr.mxu0 0.0
    %209 = vmatpush1.msra.mxu0 0.0
    %210 = vmatprep.subr.mxu0 0.0
    %211 = vmatpush1.msra.mxu0 0.0
    %212 = vmatprep.subr.mxu0 0.0
    %213 = vmatpush1.msra.mxu0 0.0
    %214 = vmatprep.subr.mxu0 0.0
    %215 = vmatpush1.msra.mxu0 0.0
    %216 = vmatprep.subr.mxu0 0.0
    %217 = vmatpush1.msra.mxu0 0.0
    %218 = vmatprep.subr.mxu0 0.0
    %219 = vmatpush1.msra.mxu0 0.0
    %220 = vmatprep.subr.mxu0 0.0
    %221 = vmatpush1.msra.mxu0 0.0
    %222 = vmatprep.subr.mxu0 0.0
    %223 = vmatpush1.msra.mxu0 0.0
    %224 = vmatprep.subr.mxu0 0.0
    %225 = vmatpush1.msra.mxu0 %v77
    %226 = vmatprep.subr.mxu0 0.0
    %227 = vmatpush1.msra.mxu0 %v76
    %228 = vmatprep.subr.mxu0 0.0
    %229 = vmatpush1.msra.mxu0 %v75
    %230 = vmatprep.subr.mxu0 0.0
    %231 = vmatpush1.msra.mxu0 %v74
    %232 = vmatprep.subr.mxu0 0.0
    %233 = vmatpush2.msra.mxu0 0.0
    %234 = vmatprep.subr.mxu0 0.0
    %235 = vmatpush2.msra.mxu0 0.0
    %236 = vmatprep.subr.mxu0 0.0
    %237 = vmatpush2.msra.mxu0 0.0
    %238 = vmatprep.subr.mxu0 0.0
    %239 = vmatpush2.msra.mxu0 0.0
    %240 = vmatprep.subr.mxu0 0.0
    %241 = vmatpush2.msra.mxu0 0.0
    %242 = vmatprep.subr.mxu0 0.0
    %243 = vmatpush2.msra.mxu0 0.0
    %244 = vmatprep.subr.mxu0 0.0
    %245 = vmatpush2.msra.mxu0 0.0
    %246 = vmatprep.subr.mxu0 0.0
    %247 = vmatpush2.msra.mxu0 0.0
    %248 = vmatprep.subr.mxu0 0.0
    %249 = vmatpush2.msra.mxu0 0.0
    %250 = vmatprep.subr.mxu0 0.0
    %251 = vmatpush2.msra.mxu0 0.0
    %252 = vmatprep.subr.mxu0 0.0
    %253 = vmatpush2.msra.mxu0 0.0
    %254 = vmatprep.subr.mxu0 0.0
    %255 = vmatpush2.msra.mxu0 0.0
    %256 = vmatprep.subr.mxu0 0.0
    %257 = vmatpush2.msra.mxu0 0.0
    %258 = vmatprep.subr.mxu0 0.0
    %259 = vmatpush2.msra.mxu0 0.0
    %260 = vmatprep.subr.mxu0 0.0
    %261 = vmatpush2.msra.mxu0 0.0
    %262 = vmatprep.subr.mxu0 0.0
    %263 = vmatpush2.msra.mxu0 0.0
    %264 = vmatprep.mubr.f32.mxu0 0.0
    %265 = vmatmul.mubr.f32.gmra.mxu0 %v189
    %v266 = vpop.f32.mrf.mxu0
    %v267 = vadd.f32 0.0, %v266
    %v268 = vpop.f32.mrf.mxu0
    %269 = vmatprep.mubr.f32.mxu0 0.0
    %270 = vmatmul.mubr.f32.gmra.mxu0 %v192
    %v271 = vpop.f32.mrf.mxu0
    %v272 = vadd.f32 0.0, %v271
    %v273 = vpop.f32.mrf.mxu0
    %274 = vmatprep.mubr.f32.mxu0 0.0
    %275 = vmatmul.mubr.f32.gmra.mxu0 %v195
    %v276 = vpop.f32.mrf.mxu0
    %v277 = vadd.f32 0.0, %v276
    %v278 = vpop.f32.mrf.mxu0
    %279 = vmatprep.mubr.f32.mxu0 0.0
    %280 = vmatmul.mubr.f32.gmra.mxu0 %v198
    %v281 = vpop.f32.mrf.mxu0
    %v282 = vadd.f32 0.0, %v281
    %v283 = vpop.f32.mrf.mxu0
    %284 = vdwg.mxu0
    %v285 = vadd.f32 %v183, %v267
    %v286 = vadd.f32 %v184, %v272
    %v287 = vadd.f32 %v185, %v277
    %v288 = vadd.f32 %v186, %v282
    %v289 = vtanh.pop %v285
    %v290 = vtanh.pop %v286
    %v291 = vtanh.pop %v287
    %v292 = vtanh.pop %v288
    %294 = vset.pattern.permute.xlu0 0
    %295 = vperm.xlu0 %294, %v65
    %v296 = vpop.permute.xlu0 %295
    %299 = vset.pattern.permute.xlu0 0
    %300 = vperm.xlu0 %299, %v66
    %v301 = vpop.permute.xlu0 %300
    %304 = vset.pattern.permute.xlu0 0
    %305 = vperm.xlu0 %304, %v67
    %v306 = vpop.permute.xlu0 %305
    %309 = vset.pattern.permute.xlu0 0
    %310 = vperm.xlu0 %309, %v68
    %v311 = vpop.permute.xlu0 %310
    %v314 = vsel %vm187, %v61, 0
    %v317 = vsel %vm187, %v62, 0
    %v320 = vsel %vm187, %v63, 0
    %v323 = vsel %vm187, %v64, 0
    %325 = vmatprep.subr.mxu0 0.0
    %326 = vmatpush1.msra.mxu0 0.0
    %327 = vmatprep.subr.mxu0 0.0
    %328 = vmatpush1.msra.mxu0 0.0
    %329 = vmatprep.subr.mxu0 0.0
    %330 = vmatpush1.msra.mxu0 0.0
    %331 = vmatprep.subr.mxu0 0.0
    %332 = vmatpush1.msra.mxu0 0.0
    %333 = vmatprep.subr.mxu0 0.0
    %334 = vmatpush1.msra.mxu0 0.0
    %335 = vmatprep.subr.mxu0 0.0
    %336 = vmatpush1.msra.mxu0 0.0
    %337 = vmatprep.subr.mxu0 0.0
    %338 = vmatpush1.msra.mxu0 0.0
    %339 = vmatprep.subr.mxu0 0.0
    %340 = vmatpush1.msra.mxu0 0.0
    %341 = vmatprep.subr.mxu0 0.0
    %342 = vmatpush1.msra.mxu0 0.0
    %343 = vmatprep.subr.mxu0 0.0
    %344 = vmatpush1.msra.mxu0 0.0
    %345 = vmatprep.subr.mxu0 0.0
    %346 = vmatpush1.msra.mxu0 0.0
    %347 = vmatprep.subr.mxu0 0.0
    %348 = vmatpush1.msra.mxu0 0.0
    %349 = vmatprep.subr.mxu0 0.0
    %350 = vmatpush1.msra.mxu0 %v292
    %351 = vmatprep.subr.mxu0 0.0
    %352 = vmatpush1.msra.mxu0 %v291
    %353 = vmatprep.subr.mxu0 0.0
    %354 = vmatpush1.msra.mxu0 %v290
    %355 = vmatprep.subr.mxu0 0.0
    %356 = vmatpush1.msra.mxu0 %v289
    %357 = vmatprep.subr.mxu0 0.0
    %358 = vmatpush2.msra.mxu0 0.0
    %359 = vmatprep.subr.mxu0 0.0
    %360 = vmatpush2.msra.mxu0 0.0
    %361 = vmatprep.subr.mxu0 0.0
    %362 = vmatpush2.msra.mxu0 0.0
    %363 = vmatprep.subr.mxu0 0.0
    %364 = vmatpush2.msra.mxu0 0.0
    %365 = vmatprep.subr.mxu0 0.0
    %366 = vmatpush2.msra.mxu0 0.0
    %367 = vmatprep.subr.mxu0 0.0
    %368 = vmatpush2.msra.mxu0 0.0
    %369 = vmatprep.subr.mxu0 0.0
    %370 = vmatpush2.msra.mxu0 0.0
    %371 = vmatprep.subr.mxu0 0.0
    %372 = vmatpush2.msra.mxu0 0.0
    %373 = vmatprep.subr.mxu0 0.0
    %374 = vmatpush2.msra.mxu0 0.0
    %375 = vmatprep.subr.mxu0 0.0
    %376 = vmatpush2.msra.mxu0 0.0
    %377 = vmatprep.subr.mxu0 0.0
    %378 = vmatpush2.msra.mxu0 0.0
    %379 = vmatprep.subr.mxu0 0.0
    %380 = vmatpush2.msra.mxu0 0.0
    %381 = vmatprep.subr.mxu0 0.0
    %382 = vmatpush2.msra.mxu0 0.0
    %383 = vmatprep.subr.mxu0 0.0
    %384 = vmatpush2.msra.mxu0 0.0
    %385 = vmatprep.subr.mxu0 0.0
    %386 = vmatpush2.msra.mxu0 0.0
    %387 = vmatprep.subr.mxu0 0.0
    %388 = vmatpush2.msra.mxu0 0.0
    %389 = vmatprep.mubr.f32.mxu0 0.0
    %390 = vmatmul.mubr.f32.gmra.mxu0 %v314
    %v391 = vpop.f32.mrf.mxu0
    %v392 = vadd.f32 %v296, %v391
    %v393 = vpop.f32.mrf.mxu0
    %394 = vmatprep.mubr.f32.mxu0 0.0
    %395 = vmatmul.mubr.f32.gmra.mxu0 %v317
    %v396 = vpop.f32.mrf.mxu0
    %v397 = vadd.f32 %v301, %v396
    %v398 = vpop.f32.mrf.mxu0
    %399 = vmatprep.mubr.f32.mxu0 0.0
    %400 = vmatmul.mubr.f32.gmra.mxu0 %v320
    %v401 = vpop.f32.mrf.mxu0
    %v402 = vadd.f32 %v306, %v401
    %v403 = vpop.f32.mrf.mxu0
    %404 = vmatprep.mubr.f32.mxu0 0.0
    %405 = vmatmul.mubr.f32.gmra.mxu0 %v323
    %v406 = vpop.f32.mrf.mxu0
    %v407 = vadd.f32 %v311, %v406
    %v408 = vpop.f32.mrf.mxu0
    %409 = vdwg.mxu0
    %v410 = vxor.u32 %v392, 2147483648
    %v411 = vxor.u32 %v397, 2147483648
    %v412 = vxor.u32 %v402, 2147483648
    %v413 = vxor.u32 %v407, 2147483648
    %v414 = vmul.f32 %v410, 1.442695
    %v415 = vpow.pop %v414
    %v416 = vmul.f32 %v411, 1.442695
    %v417 = vpow.pop %v416
    %v418 = vmul.f32 %v412, 1.442695
    %v419 = vpow.pop %v418
    %v420 = vmul.f32 %v413, 1.442695
    %v421 = vpow.pop %v420
    %v422 = vadd.f32 %v415, 1.0
    %v423 = vadd.f32 %v417, 1.0
    %v424 = vadd.f32 %v419, 1.0
    %v425 = vadd.f32 %v421, 1.0
    %v426 = vrcp.pop %v422
    %v427 = vmul.f32 1.0, %v426
    %v428 = vrcp.pop %v423
    %v429 = vmul.f32 1.0, %v428
    %v430 = vrcp.pop %v424
    %v431 = vmul.f32 1.0, %v430
    %v432 = vrcp.pop %v425
    %v433 = vmul.f32 1.0, %v432
    %v434 = vmul.f32 %v392, %v427
    %v435 = vmul.f32 %v397, %v429
    %v436 = vmul.f32 %v402, %v431
    %v437 = vmul.f32 %v407, %v433
    %439 = vset.pattern.permute.xlu0 0
    %440 = vperm.xlu0 %439, %v69
    %v441 = vpop.permute.xlu0 %440
    %444 = vset.pattern.permute.xlu0 0
    %445 = vperm.xlu0 %444, %v70
    %v446 = vpop.permute.xlu0 %445
    %449 = vset.pattern.permute.xlu0 0
    %450 = vperm.xlu0 %449, %v71
    %v451 = vpop.permute.xlu0 %450
    %454 = vset.pattern.permute.xlu0 0
    %455 = vperm.xlu0 %454, %v72
    %v456 = vpop.permute.xlu0 %455
    %v458 = vmul.f32 %v434, %v441
    %v459 = vmul.f32 %v435, %v446
    %v460 = vmul.f32 %v436, %v451
    %v461 = vmul.f32 %v437, %v456
    %vm462 = vcmask 64512
    %v463 = vsel %vm462, %v458, 0.0
    %v464 = vsel %vm462, %v459, 0.0
    %v465 = vadd.f32 %v463, %v464
    %v466 = vsel %vm462, %v460, 0.0
    %v467 = vadd.f32 %v465, %v466
    %v468 = vsel %vm462, %v461, 0.0
    %v469 = vadd.f32 %v467, %v468
    %v470 = vrot.slane %v469, 4
    %v471 = vadd.f32 %v469, %v470
    %v472 = vrot.slane %v471, 2
    %v473 = vadd.f32 %v471, %v472
    %v474 = vrot.slane %v473, 1
    %v475 = vadd.f32 %v473, %v474
    %v476 = vstv %s73
    %v477 = vadd.f32 %v475, %v476
    %vm478 = vcmask 57344
    %479 = vst.msk [vmem:[#allocation4] sm:$0x1] %vm478, %v477
    %s480 = scalar_lea.vmem %s0, 4
    %v481 = vld [vmem:[%s480] sm:$0x7]
    %v482 = vlaneseq
    %v483 = vshrl.u32 %v482, 7
    %v484 = vsub.s32 0, %v483
    %v485 = vrot.slane %v481, %v484
    %v486 = vmul.f32 %v82, %v485
    %v487 = vmul.f32 %v87, %v485
    %v488 = vmul.f32 %v92, %v485
    %v489 = vmul.f32 %v97, %v485
    %v490 = vadd.f32 %v110, %v486
    %v491 = vadd.f32 %v115, %v487
    %v492 = vadd.f32 %v120, %v488
    %v493 = vadd.f32 %v125, %v489
    %v494 = vlaneseq
    %v495 = vshrl.u32 %v494, 7
    %v496 = vsub.s32 1, %v495
    %v497 = vrot.slane %v481, %v496
    %v498 = vmul.f32 %v133, %v497
    %v499 = vmul.f32 %v137, %v497
    %v500 = vmul.f32 %v141, %v497
    %v501 = vmul.f32 %v145, %v497
    %v502 = vadd.f32 %v490, %v498
    %v503 = vadd.f32 %v491, %v499
    %v504 = vadd.f32 %v492, %v500
    %v505 = vadd.f32 %v493, %v501
    %v506 = vlaneseq
    %v507 = vshrl.u32 %v506, 7
    %v508 = vsub.s32 2, %v507
    %v509 = vrot.slane %v481, %v508
    %v510 = vmul.f32 %v161, %v509
    %v511 = vmul.f32 %v165, %v509
    %v512 = vmul.f32 %v169, %v509
    %v513 = vmul.f32 %v173, %v509
    %v514 = vadd.f32 %v502, %v510
    %v515 = vadd.f32 %v503, %v511
    %v516 = vadd.f32 %v504, %v512
    %v517 = vadd.f32 %v505, %v513
    %518 = vmatprep.subr.mxu0 0.0
    %519 = vmatpush1.msra.mxu0 0.0
    %520 = vmatprep.subr.mxu0 0.0
    %521 = vmatpush1.msra.mxu0 0.0
    %522 = vmatprep.subr.mxu0 0.0
    %523 = vmatpush1.msra.mxu0 0.0
    %524 = vmatprep.subr.mxu0 0.0
    %525 = vmatpush1.msra.mxu0 0.0
    %526 = vmatprep.subr.mxu0 0.0
    %527 = vmatpush1.msra.mxu0 0.0
    %528 = vmatprep.subr.mxu0 0.0
    %529 = vmatpush1.msra.mxu0 0.0
    %530 = vmatprep.subr.mxu0 0.0
    %531 = vmatpush1.msra.mxu0 0.0
    %532 = vmatprep.subr.mxu0 0.0
    %533 = vmatpush1.msra.mxu0 0.0
    %534 = vmatprep.subr.mxu0 0.0
    %535 = vmatpush1.msra.mxu0 0.0
    %536 = vmatprep.subr.mxu0 0.0
    %537 = vmatpush1.msra.mxu0 0.0
    %538 = vmatprep.subr.mxu0 0.0
    %539 = vmatpush1.msra.mxu0 0.0
    %540 = vmatprep.subr.mxu0 0.0
    %541 = vmatpush1.msra.mxu0 0.0
    %542 = vmatprep.subr.mxu0 0.0
    %543 = vmatpush1.msra.mxu0 %v292
    %544 = vmatprep.subr.mxu0 0.0
    %545 = vmatpush1.msra.mxu0 %v291
    %546 = vmatprep.subr.mxu0 0.0
    %547 = vmatpush1.msra.mxu0 %v290
    %548 = vmatprep.subr.mxu0 0.0
    %549 = vmatpush1.msra.mxu0 %v289
    %550 = vmatprep.subr.mxu0 0.0
    %551 = vmatpush2.msra.mxu0 0.0
    %552 = vmatprep.subr.mxu0 0.0
    %553 = vmatpush2.msra.mxu0 0.0
    %554 = vmatprep.subr.mxu0 0.0
    %555 = vmatpush2.msra.mxu0 0.0
    %556 = vmatprep.subr.mxu0 0.0
    %557 = vmatpush2.msra.mxu0 0.0
    %558 = vmatprep.subr.mxu0 0.0
    %559 = vmatpush2.msra.mxu0 0.0
    %560 = vmatprep.subr.mxu0 0.0
    %561 = vmatpush2.msra.mxu0 0.0
    %562 = vmatprep.subr.mxu0 0.0
    %563 = vmatpush2.msra.mxu0 0.0
    %564 = vmatprep.subr.mxu0 0.0
    %565 = vmatpush2.msra.mxu0 0.0
    %566 = vmatprep.subr.mxu0 0.0
    %567 = vmatpush2.msra.mxu0 0.0
    %568 = vmatprep.subr.mxu0 0.0
    %569 = vmatpush2.msra.mxu0 0.0
    %570 = vmatprep.subr.mxu0 0.0
    %571 = vmatpush2.msra.mxu0 0.0
    %572 = vmatprep.subr.mxu0 0.0
    %573 = vmatpush2.msra.mxu0 0.0
    %574 = vmatprep.subr.mxu0 0.0
    %575 = vmatpush2.msra.mxu0 0.0
    %576 = vmatprep.subr.mxu0 0.0
    %577 = vmatpush2.msra.mxu0 0.0
    %578 = vmatprep.subr.mxu0 0.0
    %579 = vmatpush2.msra.mxu0 0.0
    %580 = vmatprep.subr.mxu0 0.0
    %581 = vmatpush2.msra.mxu0 0.0
    %582 = vmatprep.mubr.f32.mxu0 0.0
    %583 = vmatmul.mubr.f32.gmra.mxu0 %v189
    %v584 = vpop.f32.mrf.mxu0
    %v585 = vadd.f32 0.0, %v584
    %v586 = vpop.f32.mrf.mxu0
    %587 = vmatprep.mubr.f32.mxu0 0.0
    %588 = vmatmul.mubr.f32.gmra.mxu0 %v192
    %v589 = vpop.f32.mrf.mxu0
    %v590 = vadd.f32 0.0, %v589
    %v591 = vpop.f32.mrf.mxu0
    %592 = vmatprep.mubr.f32.mxu0 0.0
    %593 = vmatmul.mubr.f32.gmra.mxu0 %v195
    %v594 = vpop.f32.mrf.mxu0
    %v595 = vadd.f32 0.0, %v594
    %v596 = vpop.f32.mrf.mxu0
    %597 = vmatprep.mubr.f32.mxu0 0.0
    %598 = vmatmul.mubr.f32.gmra.mxu0 %v198
    %v599 = vpop.f32.mrf.mxu0
    %v600 = vadd.f32 0.0, %v599
    %v601 = vpop.f32.mrf.mxu0
    %602 = vdwg.mxu0
    %v603 = vadd.f32 %v514, %v585
    %v604 = vadd.f32 %v515, %v590
    %v605 = vadd.f32 %v516, %v595
    %v606 = vadd.f32 %v517, %v600
    %v607 = vtanh.pop %v603
    %v608 = vtanh.pop %v604
    %v609 = vtanh.pop %v605
    %v610 = vtanh.pop %v606
    %611 = vmatprep.subr.mxu0 0.0
    %612 = vmatpush1.msra.mxu0 0.0
    %613 = vmatprep.subr.mxu0 0.0
    %614 = vmatpush1.msra.mxu0 0.0
    %615 = vmatprep.subr.mxu0 0.0
    %616 = vmatpush1.msra.mxu0 0.0
    %617 = vmatprep.subr.mxu0 0.0
    %618 = vmatpush1.msra.mxu0 0.0
    %619 = vmatprep.subr.mxu0 0.0
    %620 = vmatpush1.msra.mxu0 0.0
    %621 = vmatprep.subr.mxu0 0.0
    %622 = vmatpush1.msra.mxu0 0.0
    %623 = vmatprep.subr.mxu0 0.0
    %624 = vmatpush1.msra.mxu0 0.0
    %625 = vmatprep.subr.mxu0 0.0
    %626 = vmatpush1.msra.mxu0 0.0
    %627 = vmatprep.subr.mxu0 0.0
    %628 = vmatpush1.msra.mxu0 0.0
    %629 = vmatprep.subr.mxu0 0.0
    %630 = vmatpush1.msra.mxu0 0.0
    %631 = vmatprep.subr.mxu0 0.0
    %632 = vmatpush1.msra.mxu0 0.0
    %633 = vmatprep.subr.mxu0 0.0
    %634 = vmatpush1.msra.mxu0 0.0
    %635 = vmatprep.subr.mxu0 0.0
    %636 = vmatpush1.msra.mxu0 %v610
    %637 = vmatprep.subr.mxu0 0.0
    %638 = vmatpush1.msra.mxu0 %v609
    %639 = vmatprep.subr.mxu0 0.0
    %640 = vmatpush1.msra.mxu0 %v608
    %641 = vmatprep.subr.mxu0 0.0
    %642 = vmatpush1.msra.mxu0 %v607
    %643 = vmatprep.subr.mxu0 0.0
    %644 = vmatpush2.msra.mxu0 0.0
    %645 = vmatprep.subr.mxu0 0.0
    %646 = vmatpush2.msra.mxu0 0.0
    %647 = vmatprep.subr.mxu0 0.0
    %648 = vmatpush2.msra.mxu0 0.0
    %649 = vmatprep.subr.mxu0 0.0
    %650 = vmatpush2.msra.mxu0 0.0
    %651 = vmatprep.subr.mxu0 0.0
    %652 = vmatpush2.msra.mxu0 0.0
    %653 = vmatprep.subr.mxu0 0.0
    %654 = vmatpush2.msra.mxu0 0.0
    %655 = vmatprep.subr.mxu0 0.0
    %656 = vmatpush2.msra.mxu0 0.0
    %657 = vmatprep.subr.mxu0 0.0
    %658 = vmatpush2.msra.mxu0 0.0
    %659 = vmatprep.subr.mxu0 0.0
    %660 = vmatpush2.msra.mxu0 0.0
    %661 = vmatprep.subr.mxu0 0.0
    %662 = vmatpush2.msra.mxu0 0.0
    %663 = vmatprep.subr.mxu0 0.0
    %664 = vmatpush2.msra.mxu0 0.0
    %665 = vmatprep.subr.mxu0 0.0
    %666 = vmatpush2.msra.mxu0 0.0
    %667 = vmatprep.subr.mxu0 0.0
    %668 = vmatpush2.msra.mxu0 0.0
    %669 = vmatprep.subr.mxu0 0.0
    %670 = vmatpush2.msra.mxu0 0.0
    %671 = vmatprep.subr.mxu0 0.0
    %672 = vmatpush2.msra.mxu0 0.0
    %673 = vmatprep.subr.mxu0 0.0
    %674 = vmatpush2.msra.mxu0 0.0
    %675 = vmatprep.mubr.f32.mxu0 0.0
    %676 = vmatmul.mubr.f32.gmra.mxu0 %v314
    %v677 = vpop.f32.mrf.mxu0
    %v678 = vadd.f32 %v296, %v677
    %v679 = vpop.f32.mrf.mxu0
    %680 = vmatprep.mubr.f32.mxu0 0.0
    %681 = vmatmul.mubr.f32.gmra.mxu0 %v317
    %v682 = vpop.f32.mrf.mxu0
    %v683 = vadd.f32 %v301, %v682
    %v684 = vpop.f32.mrf.mxu0
    %685 = vmatprep.mubr.f32.mxu0 0.0
    %686 = vmatmul.mubr.f32.gmra.mxu0 %v320
    %v687 = vpop.f32.mrf.mxu0
    %v688 = vadd.f32 %v306, %v687
    %v689 = vpop.f32.mrf.mxu0
    %690 = vmatprep.mubr.f32.mxu0 0.0
    %691 = vmatmul.mubr.f32.gmra.mxu0 %v323
    %v692 = vpop.f32.mrf.mxu0
    %v693 = vadd.f32 %v311, %v692
    %v694 = vpop.f32.mrf.mxu0
    %695 = vdwg.mxu0
    %v696 = vxor.u32 %v678, 2147483648
    %v697 = vxor.u32 %v683, 2147483648
    %v698 = vxor.u32 %v688, 2147483648
    %v699 = vxor.u32 %v693, 2147483648
    %v700 = vmul.f32 %v696, 1.442695
    %v701 = vpow.pop %v700
    %v702 = vmul.f32 %v697, 1.442695
    %v703 = vpow.pop %v702
    %v704 = vmul.f32 %v698, 1.442695
    %v705 = vpow.pop %v704
    %v706 = vmul.f32 %v699, 1.442695
    %v707 = vpow.pop %v706
    %v708 = vadd.f32 %v701, 1.0
    %v709 = vadd.f32 %v703, 1.0
    %v710 = vadd.f32 %v705, 1.0
    %v711 = vadd.f32 %v707, 1.0
    %v712 = vrcp.pop %v708
    %v713 = vmul.f32 1.0, %v712
    %v714 = vrcp.pop %v709
    %v715 = vmul.f32 1.0, %v714
    %v716 = vrcp.pop %v710
    %v717 = vmul.f32 1.0, %v716
    %v718 = vrcp.pop %v711
    %v719 = vmul.f32 1.0, %v718
    %v720 = vmul.f32 %v678, %v713
    %v721 = vmul.f32 %v683, %v715
    %v722 = vmul.f32 %v688, %v717
    %v723 = vmul.f32 %v693, %v719
    %v724 = vmul.f32 %v720, %v441
    %v725 = vmul.f32 %v721, %v446
    %v726 = vmul.f32 %v722, %v451
    %v727 = vmul.f32 %v723, %v456
    %v728 = vsel %vm462, %v724, 0.0
    %v729 = vsel %vm462, %v725, 0.0
    %v730 = vadd.f32 %v728, %v729
    %v731 = vsel %vm462, %v726, 0.0
    %v732 = vadd.f32 %v730, %v731
    %v733 = vsel %vm462, %v727, 0.0
    %v734 = vadd.f32 %v732, %v733
    %v735 = vrot.slane %v734, 4
    %v736 = vadd.f32 %v734, %v735
    %v737 = vrot.slane %v736, 2
    %v738 = vadd.f32 %v736, %v737
    %v739 = vrot.slane %v738, 1
    %v740 = vadd.f32 %v738, %v739
    %v741 = vadd.f32 %v740, %v476
    %742 = vst.msk [vmem:[#allocation4 + $0x1] sm:$0x1] %vm478, %v741
    %s743 = scalar_lea.vmem %s0, 8
    %v744 = vld [vmem:[%s743] sm:$0x7]
    %v745 = vlaneseq
    %v746 = vshrl.u32 %v745, 7
    %v747 = vsub.s32 0, %v746
    %v748 = vrot.slane %v744, %v747
    %v749 = vmul.f32 %v82, %v748
    %v750 = vmul.f32 %v87, %v748
    %v751 = vmul.f32 %v92, %v748
    %v752 = vmul.f32 %v97, %v748
    %v753 = vadd.f32 %v110, %v749
    %v754 = vadd.f32 %v115, %v750
    %v755 = vadd.f32 %v120, %v751
    %v756 = vadd.f32 %v125, %v752
    %v757 = vlaneseq
    %v758 = vshrl.u32 %v757, 7
    %v759 = vsub.s32 1, %v758
    %v760 = vrot.slane %v744, %v759
    %v761 = vmul.f32 %v133, %v760
    %v762 = vmul.f32 %v137, %v760
    %v763 = vmul.f32 %v141, %v760
    %v764 = vmul.f32 %v145, %v760
    %v765 = vadd.f32 %v753, %v761
    %v766 = vadd.f32 %v754, %v762
    %v767 = vadd.f32 %v755, %v763
    %v768 = vadd.f32 %v756, %v764
    %v769 = vlaneseq
    %v770 = vshrl.u32 %v769, 7
    %v771 = vsub.s32 2, %v770
    %v772 = vrot.slane %v744, %v771
    %v773 = vmul.f32 %v161, %v772
    %v774 = vmul.f32 %v165, %v772
    %v775 = vmul.f32 %v169, %v772
    %v776 = vmul.f32 %v173, %v772
    %v777 = vadd.f32 %v765, %v773
    %v778 = vadd.f32 %v766, %v774
    %v779 = vadd.f32 %v767, %v775
    %v780 = vadd.f32 %v768, %v776
    %781 = vmatprep.subr.mxu0 0.0
    %782 = vmatpush1.msra.mxu0 0.0
    %783 = vmatprep.subr.mxu0 0.0
    %784 = vmatpush1.msra.mxu0 0.0
    %785 = vmatprep.subr.mxu0 0.0
    %786 = vmatpush1.msra.mxu0 0.0
    %787 = vmatprep.subr.mxu0 0.0
    %788 = vmatpush1.msra.mxu0 0.0
    %789 = vmatprep.subr.mxu0 0.0
    %790 = vmatpush1.msra.mxu0 0.0
    %791 = vmatprep.subr.mxu0 0.0
    %792 = vmatpush1.msra.mxu0 0.0
    %793 = vmatprep.subr.mxu0 0.0
    %794 = vmatpush1.msra.mxu0 0.0
    %795 = vmatprep.subr.mxu0 0.0
    %796 = vmatpush1.msra.mxu0 0.0
    %797 = vmatprep.subr.mxu0 0.0
    %798 = vmatpush1.msra.mxu0 0.0
    %799 = vmatprep.subr.mxu0 0.0
    %800 = vmatpush1.msra.mxu0 0.0
    %801 = vmatprep.subr.mxu0 0.0
    %802 = vmatpush1.msra.mxu0 0.0
    %803 = vmatprep.subr.mxu0 0.0
    %804 = vmatpush1.msra.mxu0 0.0
    %805 = vmatprep.subr.mxu0 0.0
    %806 = vmatpush1.msra.mxu0 %v610
    %807 = vmatprep.subr.mxu0 0.0
    %808 = vmatpush1.msra.mxu0 %v609
    %809 = vmatprep.subr.mxu0 0.0
    %810 = vmatpush1.msra.mxu0 %v608
    %811 = vmatprep.subr.mxu0 0.0
    %812 = vmatpush1.msra.mxu0 %v607
    %813 = vmatprep.subr.mxu0 0.0
    %814 = vmatpush2.msra.mxu0 0.0
    %815 = vmatprep.subr.mxu0 0.0
    %816 = vmatpush2.msra.mxu0 0.0
    %817 = vmatprep.subr.mxu0 0.0
    %818 = vmatpush2.msra.mxu0 0.0
    %819 = vmatprep.subr.mxu0 0.0
    %820 = vmatpush2.msra.mxu0 0.0
    %821 = vmatprep.subr.mxu0 0.0
    %822 = vmatpush2.msra.mxu0 0.0
    %823 = vmatprep.subr.mxu0 0.0
    %824 = vmatpush2.msra.mxu0 0.0
    %825 = vmatprep.subr.mxu0 0.0
    %826 = vmatpush2.msra.mxu0 0.0
    %827 = vmatprep.subr.mxu0 0.0
    %828 = vmatpush2.msra.mxu0 0.0
    %829 = vmatprep.subr.mxu0 0.0
    %830 = vmatpush2.msra.mxu0 0.0
    %831 = vmatprep.subr.mxu0 0.0
    %832 = vmatpush2.msra.mxu0 0.0
    %833 = vmatprep.subr.mxu0 0.0
    %834 = vmatpush2.msra.mxu0 0.0
    %835 = vmatprep.subr.mxu0 0.0
    %836 = vmatpush2.msra.mxu0 0.0
    %837 = vmatprep.subr.mxu0 0.0
    %838 = vmatpush2.msra.mxu0 0.0
    %839 = vmatprep.subr.mxu0 0.0
    %840 = vmatpush2.msra.mxu0 0.0
    %841 = vmatprep.subr.mxu0 0.0
    %842 = vmatpush2.msra.mxu0 0.0
    %843 = vmatprep.subr.mxu0 0.0
    %844 = vmatpush2.msra.mxu0 0.0
    %845 = vmatprep.mubr.f32.mxu0 0.0
    %846 = vmatmul.mubr.f32.gmra.mxu0 %v189
    %v847 = vpop.f32.mrf.mxu0
    %v848 = vadd.f32 0.0, %v847
    %v849 = vpop.f32.mrf.mxu0
    %850 = vmatprep.mubr.f32.mxu0 0.0
    %851 = vmatmul.mubr.f32.gmra.mxu0 %v192
    %v852 = vpop.f32.mrf.mxu0
    %v853 = vadd.f32 0.0, %v852
    %v854 = vpop.f32.mrf.mxu0
    %855 = vmatprep.mubr.f32.mxu0 0.0
    %856 = vmatmul.mubr.f32.gmra.mxu0 %v195
    %v857 = vpop.f32.mrf.mxu0
    %v858 = vadd.f32 0.0, %v857
    %v859 = vpop.f32.mrf.mxu0
    %860 = vmatprep.mubr.f32.mxu0 0.0
    %861 = vmatmul.mubr.f32.gmra.mxu0 %v198
    %v862 = vpop.f32.mrf.mxu0
    %v863 = vadd.f32 0.0, %v862
    %v864 = vpop.f32.mrf.mxu0
    %865 = vdwg.mxu0
    %v866 = vadd.f32 %v777, %v848
    %v867 = vadd.f32 %v778, %v853
    %v868 = vadd.f32 %v779, %v858
    %v869 = vadd.f32 %v780, %v863
    %v870 = vtanh.pop %v866
    %v871 = vtanh.pop %v867
    %v872 = vtanh.pop %v868
    %v873 = vtanh.pop %v869
    %874 = vmatprep.subr.mxu0 0.0
    %875 = vmatpush1.msra.mxu0 0.0
    %876 = vmatprep.subr.mxu0 0.0
    %877 = vmatpush1.msra.mxu0 0.0
    %878 = vmatprep.subr.mxu0 0.0
    %879 = vmatpush1.msra.mxu0 0.0
    %880 = vmatprep.subr.mxu0 0.0
    %881 = vmatpush1.msra.mxu0 0.0
    %882 = vmatprep.subr.mxu0 0.0
    %883 = vmatpush1.msra.mxu0 0.0
    %884 = vmatprep.subr.mxu0 0.0
    %885 = vmatpush1.msra.mxu0 0.0
    %886 = vmatprep.subr.mxu0 0.0
    %887 = vmatpush1.msra.mxu0 0.0
    %888 = vmatprep.subr.mxu0 0.0
    %889 = vmatpush1.msra.mxu0 0.0
    %890 = vmatprep.subr.mxu0 0.0
    %891 = vmatpush1.msra.mxu0 0.0
    %892 = vmatprep.subr.mxu0 0.0
    %893 = vmatpush1.msra.mxu0 0.0
    %894 = vmatprep.subr.mxu0 0.0
    %895 = vmatpush1.msra.mxu0 0.0
    %896 = vmatprep.subr.mxu0 0.0
    %897 = vmatpush1.msra.mxu0 0.0
    %898 = vmatprep.subr.mxu0 0.0
    %899 = vmatpush1.msra.mxu0 %v873
    %900 = vmatprep.subr.mxu0 0.0
    %901 = vmatpush1.msra.mxu0 %v872
    %902 = vmatprep.subr.mxu0 0.0
    %903 = vmatpush1.msra.mxu0 %v871
    %904 = vmatprep.subr.mxu0 0.0
    %905 = vmatpush1.msra.mxu0 %v870
    %906 = vmatprep.subr.mxu0 0.0
    %907 = vmatpush2.msra.mxu0 0.0
    %908 = vmatprep.subr.mxu0 0.0
    %909 = vmatpush2.msra.mxu0 0.0
    %910 = vmatprep.subr.mxu0 0.0
    %911 = vmatpush2.msra.mxu0 0.0
    %912 = vmatprep.subr.mxu0 0.0
    %913 = vmatpush2.msra.mxu0 0.0
    %914 = vmatprep.subr.mxu0 0.0
    %915 = vmatpush2.msra.mxu0 0.0
    %916 = vmatprep.subr.mxu0 0.0
    %917 = vmatpush2.msra.mxu0 0.0
    %918 = vmatprep.subr.mxu0 0.0
    %919 = vmatpush2.msra.mxu0 0.0
    %920 = vmatprep.subr.mxu0 0.0
    %921 = vmatpush2.msra.mxu0 0.0
    %922 = vmatprep.subr.mxu0 0.0
    %923 = vmatpush2.msra.mxu0 0.0
    %924 = vmatprep.subr.mxu0 0.0
    %925 = vmatpush2.msra.mxu0 0.0
    %926 = vmatprep.subr.mxu0 0.0
    %927 = vmatpush2.msra.mxu0 0.0
    %928 = vmatprep.subr.mxu0 0.0
    %929 = vmatpush2.msra.mxu0 0.0
    %930 = vmatprep.subr.mxu0 0.0
    %931 = vmatpush2.msra.mxu0 0.0
    %932 = vmatprep.subr.mxu0 0.0
    %933 = vmatpush2.msra.mxu0 0.0
    %934 = vmatprep.subr.mxu0 0.0
    %935 = vmatpush2.msra.mxu0 0.0
    %936 = vmatprep.subr.mxu0 0.0
    %937 = vmatpush2.msra.mxu0 0.0
    %938 = vmatprep.mubr.f32.mxu0 0.0
    %939 = vmatmul.mubr.f32.gmra.mxu0 %v314
    %v940 = vpop.f32.mrf.mxu0
    %v941 = vadd.f32 %v296, %v940
    %v942 = vpop.f32.mrf.mxu0
    %943 = vmatprep.mubr.f32.mxu0 0.0
    %944 = vmatmul.mubr.f32.gmra.mxu0 %v317
    %v945 = vpop.f32.mrf.mxu0
    %v946 = vadd.f32 %v301, %v945
    %v947 = vpop.f32.mrf.mxu0
    %948 = vmatprep.mubr.f32.mxu0 0.0
    %949 = vmatmul.mubr.f32.gmra.mxu0 %v320
    %v950 = vpop.f32.mrf.mxu0
    %v951 = vadd.f32 %v306, %v950
    %v952 = vpop.f32.mrf.mxu0
    %953 = vmatprep.mubr.f32.mxu0 0.0
    %954 = vmatmul.mubr.f32.gmra.mxu0 %v323
    %v955 = vpop.f32.mrf.mxu0
    %v956 = vadd.f32 %v311, %v955
    %v957 = vpop.f32.mrf.mxu0
    %958 = vdwg.mxu0
    %v959 = vxor.u32 %v941, 2147483648
    %v960 = vxor.u32 %v946, 2147483648
    %v961 = vxor.u32 %v951, 2147483648
    %v962 = vxor.u32 %v956, 2147483648
    %v963 = vmul.f32 %v959, 1.442695
    %v964 = vpow.pop %v963
    %v965 = vmul.f32 %v960, 1.442695
    %v966 = vpow.pop %v965
    %v967 = vmul.f32 %v961, 1.442695
    %v968 = vpow.pop %v967
    %v969 = vmul.f32 %v962, 1.442695
    %v970 = vpow.pop %v969
    %v971 = vadd.f32 %v964, 1.0
    %v972 = vadd.f32 %v966, 1.0
    %v973 = vadd.f32 %v968, 1.0
    %v974 = vadd.f32 %v970, 1.0
    %v975 = vrcp.pop %v971
    %v976 = vmul.f32 1.0, %v975
    %v977 = vrcp.pop %v972
    %v978 = vmul.f32 1.0, %v977
    %v979 = vrcp.pop %v973
    %v980 = vmul.f32 1.0, %v979
    %v981 = vrcp.pop %v974
    %v982 = vmul.f32 1.0, %v981
    %v983 = vmul.f32 %v941, %v976
    %v984 = vmul.f32 %v946, %v978
    %v985 = vmul.f32 %v951, %v980
    %v986 = vmul.f32 %v956, %v982
    %v987 = vmul.f32 %v983, %v441
    %v988 = vmul.f32 %v984, %v446
    %v989 = vmul.f32 %v985, %v451
    %v990 = vmul.f32 %v986, %v456
    %v991 = vsel %vm462, %v987, 0.0
    %v992 = vsel %vm462, %v988, 0.0
    %v993 = vadd.f32 %v991, %v992
    %v994 = vsel %vm462, %v989, 0.0
    %v995 = vadd.f32 %v993, %v994
    %v996 = vsel %vm462, %v990, 0.0
    %v997 = vadd.f32 %v995, %v996
    %v998 = vrot.slane %v997, 4
    %v999 = vadd.f32 %v997, %v998
    %v1000 = vrot.slane %v999, 2
    %v1001 = vadd.f32 %v999, %v1000
    %v1002 = vrot.slane %v1001, 1
    %v1003 = vadd.f32 %v1001, %v1002
    %v1004 = vadd.f32 %v1003, %v476
    %1005 = vst.msk [vmem:[#allocation4 + $0x2] sm:$0x1] %vm478, %v1004
    %s1006 = scalar_lea.vmem %s0, 12
    %v1007 = vld [vmem:[%s1006] sm:$0x7]
    %v1008 = vlaneseq
    %v1009 = vshrl.u32 %v1008, 7
    %v1010 = vsub.s32 0, %v1009
    %v1011 = vrot.slane %v1007, %v1010
    %v1012 = vmul.f32 %v82, %v1011
    %v1013 = vmul.f32 %v87, %v1011
    %v1014 = vmul.f32 %v92, %v1011
    %v1015 = vmul.f32 %v97, %v1011
    %v1016 = vadd.f32 %v110, %v1012
    %v1017 = vadd.f32 %v115, %v1013
    %v1018 = vadd.f32 %v120, %v1014
    %v1019 = vadd.f32 %v125, %v1015
    %v1020 = vlaneseq
    %v1021 = vshrl.u32 %v1020, 7
    %v1022 = vsub.s32 1, %v1021
    %v1023 = vrot.slane %v1007, %v1022
    %v1024 = vmul.f32 %v133, %v1023
    %v1025 = vmul.f32 %v137, %v1023
    %v1026 = vmul.f32 %v141, %v1023
    %v1027 = vmul.f32 %v145, %v1023
    %v1028 = vadd.f32 %v1016, %v1024
    %v1029 = vadd.f32 %v1017, %v1025
    %v1030 = vadd.f32 %v1018, %v1026
    %v1031 = vadd.f32 %v1019, %v1027
    %v1032 = vlaneseq
    %v1033 = vshrl.u32 %v1032, 7
    %v1034 = vsub.s32 2, %v1033
    %v1035 = vrot.slane %v1007, %v1034
    %v1036 = vmul.f32 %v161, %v1035
    %v1037 = vmul.f32 %v165, %v1035
    %v1038 = vmul.f32 %v169, %v1035
    %v1039 = vmul.f32 %v173, %v1035
    %v1040 = vadd.f32 %v1028, %v1036
    %v1041 = vadd.f32 %v1029, %v1037
    %v1042 = vadd.f32 %v1030, %v1038
    %v1043 = vadd.f32 %v1031, %v1039
    %1044 = vmatprep.subr.mxu0 0.0
    %1045 = vmatpush1.msra.mxu0 0.0
    %1046 = vmatprep.subr.mxu0 0.0
    %1047 = vmatpush1.msra.mxu0 0.0
    %1048 = vmatprep.subr.mxu0 0.0
    %1049 = vmatpush1.msra.mxu0 0.0
    %1050 = vmatprep.subr.mxu0 0.0
    %1051 = vmatpush1.msra.mxu0 0.0
    %1052 = vmatprep.subr.mxu0 0.0
    %1053 = vmatpush1.msra.mxu0 0.0
    %1054 = vmatprep.subr.mxu0 0.0
    %1055 = vmatpush1.msra.mxu0 0.0
    %1056 = vmatprep.subr.mxu0 0.0
    %1057 = vmatpush1.msra.mxu0 0.0
    %1058 = vmatprep.subr.mxu0 0.0
    %1059 = vmatpush1.msra.mxu0 0.0
    %1060 = vmatprep.subr.mxu0 0.0
    %1061 = vmatpush1.msra.mxu0 0.0
    %1062 = vmatprep.subr.mxu0 0.0
    %1063 = vmatpush1.msra.mxu0 0.0
    %1064 = vmatprep.subr.mxu0 0.0
    %1065 = vmatpush1.msra.mxu0 0.0
    %1066 = vmatprep.subr.mxu0 0.0
    %1067 = vmatpush1.msra.mxu0 0.0
    %1068 = vmatprep.subr.mxu0 0.0
    %1069 = vmatpush1.msra.mxu0 %v873
    %1070 = vmatprep.subr.mxu0 0.0
    %1071 = vmatpush1.msra.mxu0 %v872
    %1072 = vmatprep.subr.mxu0 0.0
    %1073 = vmatpush1.msra.mxu0 %v871
    %1074 = vmatprep.subr.mxu0 0.0
    %1075 = vmatpush1.msra.mxu0 %v870
    %1076 = vmatprep.subr.mxu0 0.0
    %1077 = vmatpush2.msra.mxu0 0.0
    %1078 = vmatprep.subr.mxu0 0.0
    %1079 = vmatpush2.msra.mxu0 0.0
    %1080 = vmatprep.subr.mxu0 0.0
    %1081 = vmatpush2.msra.mxu0 0.0
    %1082 = vmatprep.subr.mxu0 0.0
    %1083 = vmatpush2.msra.mxu0 0.0
    %1084 = vmatprep.subr.mxu0 0.0
    %1085 = vmatpush2.msra.mxu0 0.0
    %1086 = vmatprep.subr.mxu0 0.0
    %1087 = vmatpush2.msra.mxu0 0.0
    %1088 = vmatprep.subr.mxu0 0.0
    %1089 = vmatpush2.msra.mxu0 0.0
    %1090 = vmatprep.subr.mxu0 0.0
    %1091 = vmatpush2.msra.mxu0 0.0
    %1092 = vmatprep.subr.mxu0 0.0
    %1093 = vmatpush2.msra.mxu0 0.0
    %1094 = vmatprep.subr.mxu0 0.0
    %1095 = vmatpush2.msra.mxu0 0.0
    %1096 = vmatprep.subr.mxu0 0.0
    %1097 = vmatpush2.msra.mxu0 0.0
    %1098 = vmatprep.subr.mxu0 0.0
    %1099 = vmatpush2.msra.mxu0 0.0
    %1100 = vmatprep.subr.mxu0 0.0
    %1101 = vmatpush2.msra.mxu0 0.0
    %1102 = vmatprep.subr.mxu0 0.0
    %1103 = vmatpush2.msra.mxu0 0.0
    %1104 = vmatprep.subr.mxu0 0.0
    %1105 = vmatpush2.msra.mxu0 0.0
    %1106 = vmatprep.subr.mxu0 0.0
    %1107 = vmatpush2.msra.mxu0 0.0
    %1108 = vmatprep.mubr.f32.mxu0 0.0
    %1109 = vmatmul.mubr.f32.gmra.mxu0 %v189
    %v1110 = vpop.f32.mrf.mxu0
    %v1111 = vadd.f32 0.0, %v1110
    %v1112 = vpop.f32.mrf.mxu0
    %1113 = vmatprep.mubr.f32.mxu0 0.0
    %1114 = vmatmul.mubr.f32.gmra.mxu0 %v192
    %v1115 = vpop.f32.mrf.mxu0
    %v1116 = vadd.f32 0.0, %v1115
    %v1117 = vpop.f32.mrf.mxu0
    %1118 = vmatprep.mubr.f32.mxu0 0.0
    %1119 = vmatmul.mubr.f32.gmra.mxu0 %v195
    %v1120 = vpop.f32.mrf.mxu0
    %v1121 = vadd.f32 0.0, %v1120
    %v1122 = vpop.f32.mrf.mxu0
    %1123 = vmatprep.mubr.f32.mxu0 0.0
    %1124 = vmatmul.mubr.f32.gmra.mxu0 %v198
    %v1125 = vpop.f32.mrf.mxu0
    %v1126 = vadd.f32 0.0, %v1125
    %v1127 = vpop.f32.mrf.mxu0
    %1128 = vdwg.mxu0
    %v1129 = vadd.f32 %v1040, %v1111
    %v1130 = vadd.f32 %v1041, %v1116
    %v1131 = vadd.f32 %v1042, %v1121
    %v1132 = vadd.f32 %v1043, %v1126
    %v1133 = vtanh.pop %v1129
    %v1134 = vtanh.pop %v1130
    %v1135 = vtanh.pop %v1131
    %v1136 = vtanh.pop %v1132
    %1137 = vmatprep.subr.mxu0 0.0
    %1138 = vmatpush1.msra.mxu0 0.0
    %1139 = vmatprep.subr.mxu0 0.0
    %1140 = vmatpush1.msra.mxu0 0.0
    %1141 = vmatprep.subr.mxu0 0.0
    %1142 = vmatpush1.msra.mxu0 0.0
    %1143 = vmatprep.subr.mxu0 0.0
    %1144 = vmatpush1.msra.mxu0 0.0
    %1145 = vmatprep.subr.mxu0 0.0
    %1146 = vmatpush1.msra.mxu0 0.0
    %1147 = vmatprep.subr.mxu0 0.0
    %1148 = vmatpush1.msra.mxu0 0.0
    %1149 = vmatprep.subr.mxu0 0.0
    %1150 = vmatpush1.msra.mxu0 0.0
    %1151 = vmatprep.subr.mxu0 0.0
    %1152 = vmatpush1.msra.mxu0 0.0
    %1153 = vmatprep.subr.mxu0 0.0
    %1154 = vmatpush1.msra.mxu0 0.0
    %1155 = vmatprep.subr.mxu0 0.0
    %1156 = vmatpush1.msra.mxu0 0.0
    %1157 = vmatprep.subr.mxu0 0.0
    %1158 = vmatpush1.msra.mxu0 0.0
    %1159 = vmatprep.subr.mxu0 0.0
    %1160 = vmatpush1.msra.mxu0 0.0
    %1161 = vmatprep.subr.mxu0 0.0
    %1162 = vmatpush1.msra.mxu0 %v1136
    %1163 = vmatprep.subr.mxu0 0.0
    %1164 = vmatpush1.msra.mxu0 %v1135
    %1165 = vmatprep.subr.mxu0 0.0
    %1166 = vmatpush1.msra.mxu0 %v1134
    %1167 = vmatprep.subr.mxu0 0.0
    %1168 = vmatpush1.msra.mxu0 %v1133
    %1169 = vmatprep.subr.mxu0 0.0
    %1170 = vmatpush2.msra.mxu0 0.0
    %1171 = vmatprep.subr.mxu0 0.0
    %1172 = vmatpush2.msra.mxu0 0.0
    %1173 = vmatprep.subr.mxu0 0.0
    %1174 = vmatpush2.msra.mxu0 0.0
    %1175 = vmatprep.subr.mxu0 0.0
    %1176 = vmatpush2.msra.mxu0 0.0
    %1177 = vmatprep.subr.mxu0 0.0
    %1178 = vmatpush2.msra.mxu0 0.0
    %1179 = vmatprep.subr.mxu0 0.0
    %1180 = vmatpush2.msra.mxu0 0.0
    %1181 = vmatprep.subr.mxu0 0.0
    %1182 = vmatpush2.msra.mxu0 0.0
    %1183 = vmatprep.subr.mxu0 0.0
    %1184 = vmatpush2.msra.mxu0 0.0
    %1185 = vmatprep.subr.mxu0 0.0
    %1186 = vmatpush2.msra.mxu0 0.0
    %1187 = vmatprep.subr.mxu0 0.0
    %1188 = vmatpush2.msra.mxu0 0.0
    %1189 = vmatprep.subr.mxu0 0.0
    %1190 = vmatpush2.msra.mxu0 0.0
    %1191 = vmatprep.subr.mxu0 0.0
    %1192 = vmatpush2.msra.mxu0 0.0
    %1193 = vmatprep.subr.mxu0 0.0
    %1194 = vmatpush2.msra.mxu0 0.0
    %1195 = vmatprep.subr.mxu0 0.0
    %1196 = vmatpush2.msra.mxu0 0.0
    %1197 = vmatprep.subr.mxu0 0.0
    %1198 = vmatpush2.msra.mxu0 0.0
    %1199 = vmatprep.subr.mxu0 0.0
    %1200 = vmatpush2.msra.mxu0 0.0
    %1201 = vmatprep.mubr.f32.mxu0 0.0
    %1202 = vmatmul.mubr.f32.gmra.mxu0 %v314
    %v1203 = vpop.f32.mrf.mxu0
    %v1204 = vadd.f32 %v296, %v1203
    %v1205 = vpop.f32.mrf.mxu0
    %1206 = vmatprep.mubr.f32.mxu0 0.0
    %1207 = vmatmul.mubr.f32.gmra.mxu0 %v317
    %v1208 = vpop.f32.mrf.mxu0
    %v1209 = vadd.f32 %v301, %v1208
    %v1210 = vpop.f32.mrf.mxu0
    %1211 = vmatprep.mubr.f32.mxu0 0.0
    %1212 = vmatmul.mubr.f32.gmra.mxu0 %v320
    %v1213 = vpop.f32.mrf.mxu0
    %v1214 = vadd.f32 %v306, %v1213
    %v1215 = vpop.f32.mrf.mxu0
    %1216 = vmatprep.mubr.f32.mxu0 0.0
    %1217 = vmatmul.mubr.f32.gmra.mxu0 %v323
    %v1218 = vpop.f32.mrf.mxu0
    %v1219 = vadd.f32 %v311, %v1218
    %v1220 = vpop.f32.mrf.mxu0
    %1221 = vdwg.mxu0
    %v1222 = vxor.u32 %v1204, 2147483648
    %v1223 = vxor.u32 %v1209, 2147483648
    %v1224 = vxor.u32 %v1214, 2147483648
    %v1225 = vxor.u32 %v1219, 2147483648
    %v1226 = vmul.f32 %v1222, 1.442695
    %v1227 = vpow.pop %v1226
    %v1228 = vmul.f32 %v1223, 1.442695
    %v1229 = vpow.pop %v1228
    %v1230 = vmul.f32 %v1224, 1.442695
    %v1231 = vpow.pop %v1230
    %v1232 = vmul.f32 %v1225, 1.442695
    %v1233 = vpow.pop %v1232
    %v1234 = vadd.f32 %v1227, 1.0
    %v1235 = vadd.f32 %v1229, 1.0
    %v1236 = vadd.f32 %v1231, 1.0
    %v1237 = vadd.f32 %v1233, 1.0
    %v1238 = vrcp.pop %v1234
    %v1239 = vmul.f32 1.0, %v1238
    %v1240 = vrcp.pop %v1235
    %v1241 = vmul.f32 1.0, %v1240
    %v1242 = vrcp.pop %v1236
    %v1243 = vmul.f32 1.0, %v1242
    %v1244 = vrcp.pop %v1237
    %v1245 = vmul.f32 1.0, %v1244
    %v1246 = vmul.f32 %v1204, %v1239
    %v1247 = vmul.f32 %v1209, %v1241
    %v1248 = vmul.f32 %v1214, %v1243
    %v1249 = vmul.f32 %v1219, %v1245
    %v1250 = vmul.f32 %v1246, %v441
    %v1251 = vmul.f32 %v1247, %v446
    %v1252 = vmul.f32 %v1248, %v451
    %v1253 = vmul.f32 %v1249, %v456
    %v1254 = vsel %vm462, %v1250, 0.0
    %v1255 = vsel %vm462, %v1251, 0.0
    %v1256 = vadd.f32 %v1254, %v1255
    %v1257 = vsel %vm462, %v1252, 0.0
    %v1258 = vadd.f32 %v1256, %v1257
    %v1259 = vsel %vm462, %v1253, 0.0
    %v1260 = vadd.f32 %v1258, %v1259
    %v1261 = vrot.slane %v1260, 4
    %v1262 = vadd.f32 %v1260, %v1261
    %v1263 = vrot.slane %v1262, 2
    %v1264 = vadd.f32 %v1262, %v1263
    %v1265 = vrot.slane %v1264, 1
    %v1266 = vadd.f32 %v1264, %v1265
    %v1267 = vadd.f32 %v1266, %v476
    %1268 = vst.msk [vmem:[#allocation4 + $0x3] sm:$0x1] %vm478, %v1267
    %s1269 = scalar_lea.vmem %s0, 16
    %v1270 = vld [vmem:[%s1269] sm:$0x7]
    %v1271 = vlaneseq
    %v1272 = vshrl.u32 %v1271, 7
    %v1273 = vsub.s32 0, %v1272
    %v1274 = vrot.slane %v1270, %v1273
    %v1275 = vmul.f32 %v82, %v1274
    %v1276 = vmul.f32 %v87, %v1274
    %v1277 = vmul.f32 %v92, %v1274
    %v1278 = vmul.f32 %v97, %v1274
    %v1279 = vadd.f32 %v110, %v1275
    %v1280 = vadd.f32 %v115, %v1276
    %v1281 = vadd.f32 %v120, %v1277
    %v1282 = vadd.f32 %v125, %v1278
    %v1283 = vlaneseq
    %v1284 = vshrl.u32 %v1283, 7
    %v1285 = vsub.s32 1, %v1284
    %v1286 = vrot.slane %v1270, %v1285
    %v1287 = vmul.f32 %v133, %v1286
    %v1288 = vmul.f32 %v137, %v1286
    %v1289 = vmul.f32 %v141, %v1286
    %v1290 = vmul.f32 %v145, %v1286
    %v1291 = vadd.f32 %v1279, %v1287
    %v1292 = vadd.f32 %v1280, %v1288
    %v1293 = vadd.f32 %v1281, %v1289
    %v1294 = vadd.f32 %v1282, %v1290
    %v1295 = vlaneseq
    %v1296 = vshrl.u32 %v1295, 7
    %v1297 = vsub.s32 2, %v1296
    %v1298 = vrot.slane %v1270, %v1297
    %v1299 = vmul.f32 %v161, %v1298
    %v1300 = vmul.f32 %v165, %v1298
    %v1301 = vmul.f32 %v169, %v1298
    %v1302 = vmul.f32 %v173, %v1298
    %v1303 = vadd.f32 %v1291, %v1299
    %v1304 = vadd.f32 %v1292, %v1300
    %v1305 = vadd.f32 %v1293, %v1301
    %v1306 = vadd.f32 %v1294, %v1302
    %1307 = vmatprep.subr.mxu0 0.0
    %1308 = vmatpush1.msra.mxu0 0.0
    %1309 = vmatprep.subr.mxu0 0.0
    %1310 = vmatpush1.msra.mxu0 0.0
    %1311 = vmatprep.subr.mxu0 0.0
    %1312 = vmatpush1.msra.mxu0 0.0
    %1313 = vmatprep.subr.mxu0 0.0
    %1314 = vmatpush1.msra.mxu0 0.0
    %1315 = vmatprep.subr.mxu0 0.0
    %1316 = vmatpush1.msra.mxu0 0.0
    %1317 = vmatprep.subr.mxu0 0.0
    %1318 = vmatpush1.msra.mxu0 0.0
    %1319 = vmatprep.subr.mxu0 0.0
    %1320 = vmatpush1.msra.mxu0 0.0
    %1321 = vmatprep.subr.mxu0 0.0
    %1322 = vmatpush1.msra.mxu0 0.0
    %1323 = vmatprep.subr.mxu0 0.0
    %1324 = vmatpush1.msra.mxu0 0.0
    %1325 = vmatprep.subr.mxu0 0.0
    %1326 = vmatpush1.msra.mxu0 0.0
    %1327 = vmatprep.subr.mxu0 0.0
    %1328 = vmatpush1.msra.mxu0 0.0
    %1329 = vmatprep.subr.mxu0 0.0
    %1330 = vmatpush1.msra.mxu0 0.0
    %1331 = vmatprep.subr.mxu0 0.0
    %1332 = vmatpush1.msra.mxu0 %v1136
    %1333 = vmatprep.subr.mxu0 0.0
    %1334 = vmatpush1.msra.mxu0 %v1135
    %1335 = vmatprep.subr.mxu0 0.0
    %1336 = vmatpush1.msra.mxu0 %v1134
    %1337 = vmatprep.subr.mxu0 0.0
    %1338 = vmatpush1.msra.mxu0 %v1133
    %1339 = vmatprep.subr.mxu0 0.0
    %1340 = vmatpush2.msra.mxu0 0.0
    %1341 = vmatprep.subr.mxu0 0.0
    %1342 = vmatpush2.msra.mxu0 0.0
    %1343 = vmatprep.subr.mxu0 0.0
    %1344 = vmatpush2.msra.mxu0 0.0
    %1345 = vmatprep.subr.mxu0 0.0
    %1346 = vmatpush2.msra.mxu0 0.0
    %1347 = vmatprep.subr.mxu0 0.0
    %1348 = vmatpush2.msra.mxu0 0.0
    %1349 = vmatprep.subr.mxu0 0.0
    %1350 = vmatpush2.msra.mxu0 0.0
    %1351 = vmatprep.subr.mxu0 0.0
    %1352 = vmatpush2.msra.mxu0 0.0
    %1353 = vmatprep.subr.mxu0 0.0
    %1354 = vmatpush2.msra.mxu0 0.0
    %1355 = vmatprep.subr.mxu0 0.0
    %1356 = vmatpush2.msra.mxu0 0.0
    %1357 = vmatprep.subr.mxu0 0.0
    %1358 = vmatpush2.msra.mxu0 0.0
    %1359 = vmatprep.subr.mxu0 0.0
    %1360 = vmatpush2.msra.mxu0 0.0
    %1361 = vmatprep.subr.mxu0 0.0
    %1362 = vmatpush2.msra.mxu0 0.0
    %1363 = vmatprep.subr.mxu0 0.0
    %1364 = vmatpush2.msra.mxu0 0.0
    %1365 = vmatprep.subr.mxu0 0.0
    %1366 = vmatpush2.msra.mxu0 0.0
    %1367 = vmatprep.subr.mxu0 0.0
    %1368 = vmatpush2.msra.mxu0 0.0
    %1369 = vmatprep.subr.mxu0 0.0
    %1370 = vmatpush2.msra.mxu0 0.0
    %1371 = vmatprep.mubr.f32.mxu0 0.0
    %1372 = vmatmul.mubr.f32.gmra.mxu0 %v189
    %v1373 = vpop.f32.mrf.mxu0
    %v1374 = vadd.f32 0.0, %v1373
    %v1375 = vpop.f32.mrf.mxu0
    %1376 = vmatprep.mubr.f32.mxu0 0.0
    %1377 = vmatmul.mubr.f32.gmra.mxu0 %v192
    %v1378 = vpop.f32.mrf.mxu0
    %v1379 = vadd.f32 0.0, %v1378
    %v1380 = vpop.f32.mrf.mxu0
    %1381 = vmatprep.mubr.f32.mxu0 0.0
    %1382 = vmatmul.mubr.f32.gmra.mxu0 %v195
    %v1383 = vpop.f32.mrf.mxu0
    %v1384 = vadd.f32 0.0, %v1383
    %v1385 = vpop.f32.mrf.mxu0
    %1386 = vmatprep.mubr.f32.mxu0 0.0
    %1387 = vmatmul.mubr.f32.gmra.mxu0 %v198
    %v1388 = vpop.f32.mrf.mxu0
    %v1389 = vadd.f32 0.0, %v1388
    %v1390 = vpop.f32.mrf.mxu0
    %1391 = vdwg.mxu0
    %v1392 = vadd.f32 %v1303, %v1374
    %v1393 = vadd.f32 %v1304, %v1379
    %v1394 = vadd.f32 %v1305, %v1384
    %v1395 = vadd.f32 %v1306, %v1389
    %v1396 = vtanh.pop %v1392
    %v1397 = vtanh.pop %v1393
    %v1398 = vtanh.pop %v1394
    %v1399 = vtanh.pop %v1395
    %1400 = vmatprep.subr.mxu0 0.0
    %1401 = vmatpush1.msra.mxu0 0.0
    %1402 = vmatprep.subr.mxu0 0.0
    %1403 = vmatpush1.msra.mxu0 0.0
    %1404 = vmatprep.subr.mxu0 0.0
    %1405 = vmatpush1.msra.mxu0 0.0
    %1406 = vmatprep.subr.mxu0 0.0
    %1407 = vmatpush1.msra.mxu0 0.0
    %1408 = vmatprep.subr.mxu0 0.0
    %1409 = vmatpush1.msra.mxu0 0.0
    %1410 = vmatprep.subr.mxu0 0.0
    %1411 = vmatpush1.msra.mxu0 0.0
    %1412 = vmatprep.subr.mxu0 0.0
    %1413 = vmatpush1.msra.mxu0 0.0
    %1414 = vmatprep.subr.mxu0 0.0
    %1415 = vmatpush1.msra.mxu0 0.0
    %1416 = vmatprep.subr.mxu0 0.0
    %1417 = vmatpush1.msra.mxu0 0.0
    %1418 = vmatprep.subr.mxu0 0.0
    %1419 = vmatpush1.msra.mxu0 0.0
    %1420 = vmatprep.subr.mxu0 0.0
    %1421 = vmatpush1.msra.mxu0 0.0
    %1422 = vmatprep.subr.mxu0 0.0
    %1423 = vmatpush1.msra.mxu0 0.0
    %1424 = vmatprep.subr.mxu0 0.0
    %1425 = vmatpush1.msra.mxu0 %v1399
    %1426 = vmatprep.subr.mxu0 0.0
    %1427 = vmatpush1.msra.mxu0 %v1398
    %1428 = vmatprep.subr.mxu0 0.0
    %1429 = vmatpush1.msra.mxu0 %v1397
    %1430 = vmatprep.subr.mxu0 0.0
    %1431 = vmatpush1.msra.mxu0 %v1396
    %1432 = vmatprep.subr.mxu0 0.0
    %1433 = vmatpush2.msra.mxu0 0.0
    %1434 = vmatprep.subr.mxu0 0.0
    %1435 = vmatpush2.msra.mxu0 0.0
    %1436 = vmatprep.subr.mxu0 0.0
    %1437 = vmatpush2.msra.mxu0 0.0
    %1438 = vmatprep.subr.mxu0 0.0
    %1439 = vmatpush2.msra.mxu0 0.0
    %1440 = vmatprep.subr.mxu0 0.0
    %1441 = vmatpush2.msra.mxu0 0.0
    %1442 = vmatprep.subr.mxu0 0.0
    %1443 = vmatpush2.msra.mxu0 0.0
    %1444 = vmatprep.subr.mxu0 0.0
    %1445 = vmatpush2.msra.mxu0 0.0
    %1446 = vmatprep.subr.mxu0 0.0
    %1447 = vmatpush2.msra.mxu0 0.0
    %1448 = vmatprep.subr.mxu0 0.0
    %1449 = vmatpush2.msra.mxu0 0.0
    %1450 = vmatprep.subr.mxu0 0.0
    %1451 = vmatpush2.msra.mxu0 0.0
    %1452 = vmatprep.subr.mxu0 0.0
    %1453 = vmatpush2.msra.mxu0 0.0
    %1454 = vmatprep.subr.mxu0 0.0
    %1455 = vmatpush2.msra.mxu0 0.0
    %1456 = vmatprep.subr.mxu0 0.0
    %1457 = vmatpush2.msra.mxu0 0.0
    %1458 = vmatprep.subr.mxu0 0.0
    %1459 = vmatpush2.msra.mxu0 0.0
    %1460 = vmatprep.subr.mxu0 0.0
    %1461 = vmatpush2.msra.mxu0 0.0
    %1462 = vmatprep.subr.mxu0 0.0
    %1463 = vmatpush2.msra.mxu0 0.0
    %1464 = vmatprep.mubr.f32.mxu0 0.0
    %1465 = vmatmul.mubr.f32.gmra.mxu0 %v314
    %v1466 = vpop.f32.mrf.mxu0
    %v1467 = vadd.f32 %v296, %v1466
    %v1468 = vpop.f32.mrf.mxu0
    %1469 = vmatprep.mubr.f32.mxu0 0.0
    %1470 = vmatmul.mubr.f32.gmra.mxu0 %v317
    %v1471 = vpop.f32.mrf.mxu0
    %v1472 = vadd.f32 %v301, %v1471
    %v1473 = vpop.f32.mrf.mxu0
    %1474 = vmatprep.mubr.f32.mxu0 0.0
    %1475 = vmatmul.mubr.f32.gmra.mxu0 %v320
    %v1476 = vpop.f32.mrf.mxu0
    %v1477 = vadd.f32 %v306, %v1476
    %v1478 = vpop.f32.mrf.mxu0
    %1479 = vmatprep.mubr.f32.mxu0 0.0
    %1480 = vmatmul.mubr.f32.gmra.mxu0 %v323
    %v1481 = vpop.f32.mrf.mxu0
    %v1482 = vadd.f32 %v311, %v1481
    %v1483 = vpop.f32.mrf.mxu0
    %1484 = vdwg.mxu0
    %v1485 = vxor.u32 %v1467, 2147483648
    %v1486 = vxor.u32 %v1472, 2147483648
    %v1487 = vxor.u32 %v1477, 2147483648
    %v1488 = vxor.u32 %v1482, 2147483648
    %v1489 = vmul.f32 %v1485, 1.442695
    %v1490 = vpow.pop %v1489
    %v1491 = vmul.f32 %v1486, 1.442695
    %v1492 = vpow.pop %v1491
    %v1493 = vmul.f32 %v1487, 1.442695
    %v1494 = vpow.pop %v1493
    %v1495 = vmul.f32 %v1488, 1.442695
    %v1496 = vpow.pop %v1495
    %v1497 = vadd.f32 %v1490, 1.0
    %v1498 = vadd.f32 %v1492, 1.0
    %v1499 = vadd.f32 %v1494, 1.0
    %v1500 = vadd.f32 %v1496, 1.0
    %v1501 = vrcp.pop %v1497
    %v1502 = vmul.f32 1.0, %v1501
    %v1503 = vrcp.pop %v1498
    %v1504 = vmul.f32 1.0, %v1503
    %v1505 = vrcp.pop %v1499
    %v1506 = vmul.f32 1.0, %v1505
    %v1507 = vrcp.pop %v1500
    %v1508 = vmul.f32 1.0, %v1507
    %v1509 = vmul.f32 %v1467, %v1502
    %v1510 = vmul.f32 %v1472, %v1504
    %v1511 = vmul.f32 %v1477, %v1506
    %v1512 = vmul.f32 %v1482, %v1508
    %v1513 = vmul.f32 %v1509, %v441
    %v1514 = vmul.f32 %v1510, %v446
    %v1515 = vmul.f32 %v1511, %v451
    %v1516 = vmul.f32 %v1512, %v456
    %v1517 = vsel %vm462, %v1513, 0.0
    %v1518 = vsel %vm462, %v1514, 0.0
    %v1519 = vadd.f32 %v1517, %v1518
    %v1520 = vsel %vm462, %v1515, 0.0
    %v1521 = vadd.f32 %v1519, %v1520
    %v1522 = vsel %vm462, %v1516, 0.0
    %v1523 = vadd.f32 %v1521, %v1522
    %v1524 = vrot.slane %v1523, 4
    %v1525 = vadd.f32 %v1523, %v1524
    %v1526 = vrot.slane %v1525, 2
    %v1527 = vadd.f32 %v1525, %v1526
    %v1528 = vrot.slane %v1527, 1
    %v1529 = vadd.f32 %v1527, %v1528
    %v1530 = vadd.f32 %v1529, %v476
    %1531 = vst.msk [vmem:[#allocation4 + $0x4] sm:$0x1] %vm478, %v1530
    %s1532 = scalar_lea.vmem %s0, 20
    %v1533 = vld [vmem:[%s1532] sm:$0x7]
    %v1534 = vlaneseq
    %v1535 = vshrl.u32 %v1534, 7
    %v1536 = vsub.s32 0, %v1535
    %v1537 = vrot.slane %v1533, %v1536
    %v1538 = vmul.f32 %v82, %v1537
    %v1539 = vmul.f32 %v87, %v1537
    %v1540 = vmul.f32 %v92, %v1537
    %v1541 = vmul.f32 %v97, %v1537
    %v1542 = vadd.f32 %v110, %v1538
    %v1543 = vadd.f32 %v115, %v1539
    %v1544 = vadd.f32 %v120, %v1540
    %v1545 = vadd.f32 %v125, %v1541
    %v1546 = vlaneseq
    %v1547 = vshrl.u32 %v1546, 7
    %v1548 = vsub.s32 1, %v1547
    %v1549 = vrot.slane %v1533, %v1548
    %v1550 = vmul.f32 %v133, %v1549
    %v1551 = vmul.f32 %v137, %v1549
    %v1552 = vmul.f32 %v141, %v1549
    %v1553 = vmul.f32 %v145, %v1549
    %v1554 = vadd.f32 %v1542, %v1550
    %v1555 = vadd.f32 %v1543, %v1551
    %v1556 = vadd.f32 %v1544, %v1552
    %v1557 = vadd.f32 %v1545, %v1553
    %v1558 = vlaneseq
    %v1559 = vshrl.u32 %v1558, 7
    %v1560 = vsub.s32 2, %v1559
    %v1561 = vrot.slane %v1533, %v1560
    %v1562 = vmul.f32 %v161, %v1561
    %v1563 = vmul.f32 %v165, %v1561
    %v1564 = vmul.f32 %v169, %v1561
    %v1565 = vmul.f32 %v173, %v1561
    %v1566 = vadd.f32 %v1554, %v1562
    %v1567 = vadd.f32 %v1555, %v1563
    %v1568 = vadd.f32 %v1556, %v1564
    %v1569 = vadd.f32 %v1557, %v1565
    %1570 = vmatprep.subr.mxu0 0.0
    %1571 = vmatpush1.msra.mxu0 0.0
    %1572 = vmatprep.subr.mxu0 0.0
    %1573 = vmatpush1.msra.mxu0 0.0
    %1574 = vmatprep.subr.mxu0 0.0
    %1575 = vmatpush1.msra.mxu0 0.0
    %1576 = vmatprep.subr.mxu0 0.0
    %1577 = vmatpush1.msra.mxu0 0.0
    %1578 = vmatprep.subr.mxu0 0.0
    %1579 = vmatpush1.msra.mxu0 0.0
    %1580 = vmatprep.subr.mxu0 0.0
    %1581 = vmatpush1.msra.mxu0 0.0
    %1582 = vmatprep.subr.mxu0 0.0
    %1583 = vmatpush1.msra.mxu0 0.0
    %1584 = vmatprep.subr.mxu0 0.0
    %1585 = vmatpush1.msra.mxu0 0.0
    %1586 = vmatprep.subr.mxu0 0.0
    %1587 = vmatpush1.msra.mxu0 0.0
    %1588 = vmatprep.subr.mxu0 0.0
    %1589 = vmatpush1.msra.mxu0 0.0
    %1590 = vmatprep.subr.mxu0 0.0
    %1591 = vmatpush1.msra.mxu0 0.0
    %1592 = vmatprep.subr.mxu0 0.0
    %1593 = vmatpush1.msra.mxu0 0.0
    %1594 = vmatprep.subr.mxu0 0.0
    %1595 = vmatpush1.msra.mxu0 %v1399
    %1596 = vmatprep.subr.mxu0 0.0
    %1597 = vmatpush1.msra.mxu0 %v1398
    %1598 = vmatprep.subr.mxu0 0.0
    %1599 = vmatpush1.msra.mxu0 %v1397
    %1600 = vmatprep.subr.mxu0 0.0
    %1601 = vmatpush1.msra.mxu0 %v1396
    %1602 = vmatprep.subr.mxu0 0.0
    %1603 = vmatpush2.msra.mxu0 0.0
    %1604 = vmatprep.subr.mxu0 0.0
    %1605 = vmatpush2.msra.mxu0 0.0
    %1606 = vmatprep.subr.mxu0 0.0
    %1607 = vmatpush2.msra.mxu0 0.0
    %1608 = vmatprep.subr.mxu0 0.0
    %1609 = vmatpush2.msra.mxu0 0.0
    %1610 = vmatprep.subr.mxu0 0.0
    %1611 = vmatpush2.msra.mxu0 0.0
    %1612 = vmatprep.subr.mxu0 0.0
    %1613 = vmatpush2.msra.mxu0 0.0
    %1614 = vmatprep.subr.mxu0 0.0
    %1615 = vmatpush2.msra.mxu0 0.0
    %1616 = vmatprep.subr.mxu0 0.0
    %1617 = vmatpush2.msra.mxu0 0.0
    %1618 = vmatprep.subr.mxu0 0.0
    %1619 = vmatpush2.msra.mxu0 0.0
    %1620 = vmatprep.subr.mxu0 0.0
    %1621 = vmatpush2.msra.mxu0 0.0
    %1622 = vmatprep.subr.mxu0 0.0
    %1623 = vmatpush2.msra.mxu0 0.0
    %1624 = vmatprep.subr.mxu0 0.0
    %1625 = vmatpush2.msra.mxu0 0.0
    %1626 = vmatprep.subr.mxu0 0.0
    %1627 = vmatpush2.msra.mxu0 0.0
    %1628 = vmatprep.subr.mxu0 0.0
    %1629 = vmatpush2.msra.mxu0 0.0
    %1630 = vmatprep.subr.mxu0 0.0
    %1631 = vmatpush2.msra.mxu0 0.0
    %1632 = vmatprep.subr.mxu0 0.0
    %1633 = vmatpush2.msra.mxu0 0.0
    %1634 = vmatprep.mubr.f32.mxu0 0.0
    %1635 = vmatmul.mubr.f32.gmra.mxu0 %v189
    %v1636 = vpop.f32.mrf.mxu0
    %v1637 = vadd.f32 0.0, %v1636
    %v1638 = vpop.f32.mrf.mxu0
    %1639 = vmatprep.mubr.f32.mxu0 0.0
    %1640 = vmatmul.mubr.f32.gmra.mxu0 %v192
    %v1641 = vpop.f32.mrf.mxu0
    %v1642 = vadd.f32 0.0, %v1641
    %v1643 = vpop.f32.mrf.mxu0
    %1644 = vmatprep.mubr.f32.mxu0 0.0
    %1645 = vmatmul.mubr.f32.gmra.mxu0 %v195
    %v1646 = vpop.f32.mrf.mxu0
    %v1647 = vadd.f32 0.0, %v1646
    %v1648 = vpop.f32.mrf.mxu0
    %1649 = vmatprep.mubr.f32.mxu0 0.0
    %1650 = vmatmul.mubr.f32.gmra.mxu0 %v198
    %v1651 = vpop.f32.mrf.mxu0
    %v1652 = vadd.f32 0.0, %v1651
    %v1653 = vpop.f32.mrf.mxu0
    %1654 = vdwg.mxu0
    %v1655 = vadd.f32 %v1566, %v1637
    %v1656 = vadd.f32 %v1567, %v1642
    %v1657 = vadd.f32 %v1568, %v1647
    %v1658 = vadd.f32 %v1569, %v1652
    %v1659 = vtanh.pop %v1655
    %v1660 = vtanh.pop %v1656
    %v1661 = vtanh.pop %v1657
    %v1662 = vtanh.pop %v1658
    %1663 = vmatprep.subr.mxu0 0.0
    %1664 = vmatpush1.msra.mxu0 0.0
    %1665 = vmatprep.subr.mxu0 0.0
    %1666 = vmatpush1.msra.mxu0 0.0
    %1667 = vmatprep.subr.mxu0 0.0
    %1668 = vmatpush1.msra.mxu0 0.0
    %1669 = vmatprep.subr.mxu0 0.0
    %1670 = vmatpush1.msra.mxu0 0.0
    %1671 = vmatprep.subr.mxu0 0.0
    %1672 = vmatpush1.msra.mxu0 0.0
    %1673 = vmatprep.subr.mxu0 0.0
    %1674 = vmatpush1.msra.mxu0 0.0
    %1675 = vmatprep.subr.mxu0 0.0
    %1676 = vmatpush1.msra.mxu0 0.0
    %1677 = vmatprep.subr.mxu0 0.0
    %1678 = vmatpush1.msra.mxu0 0.0
    %1679 = vmatprep.subr.mxu0 0.0
    %1680 = vmatpush1.msra.mxu0 0.0
    %1681 = vmatprep.subr.mxu0 0.0
    %1682 = vmatpush1.msra.mxu0 0.0
    %1683 = vmatprep.subr.mxu0 0.0
    %1684 = vmatpush1.msra.mxu0 0.0
    %1685 = vmatprep.subr.mxu0 0.0
    %1686 = vmatpush1.msra.mxu0 0.0
    %1687 = vmatprep.subr.mxu0 0.0
    %1688 = vmatpush1.msra.mxu0 %v1662
    %1689 = vmatprep.subr.mxu0 0.0
    %1690 = vmatpush1.msra.mxu0 %v1661
    %1691 = vmatprep.subr.mxu0 0.0
    %1692 = vmatpush1.msra.mxu0 %v1660
    %1693 = vmatprep.subr.mxu0 0.0
    %1694 = vmatpush1.msra.mxu0 %v1659
    %1695 = vmatprep.subr.mxu0 0.0
    %1696 = vmatpush2.msra.mxu0 0.0
    %1697 = vmatprep.subr.mxu0 0.0
    %1698 = vmatpush2.msra.mxu0 0.0
    %1699 = vmatprep.subr.mxu0 0.0
    %1700 = vmatpush2.msra.mxu0 0.0
    %1701 = vmatprep.subr.mxu0 0.0
    %1702 = vmatpush2.msra.mxu0 0.0
    %1703 = vmatprep.subr.mxu0 0.0
    %1704 = vmatpush2.msra.mxu0 0.0
    %1705 = vmatprep.subr.mxu0 0.0
    %1706 = vmatpush2.msra.mxu0 0.0
    %1707 = vmatprep.subr.mxu0 0.0
    %1708 = vmatpush2.msra.mxu0 0.0
    %1709 = vmatprep.subr.mxu0 0.0
    %1710 = vmatpush2.msra.mxu0 0.0
    %1711 = vmatprep.subr.mxu0 0.0
    %1712 = vmatpush2.msra.mxu0 0.0
    %1713 = vmatprep.subr.mxu0 0.0
    %1714 = vmatpush2.msra.mxu0 0.0
    %1715 = vmatprep.subr.mxu0 0.0
    %1716 = vmatpush2.msra.mxu0 0.0
    %1717 = vmatprep.subr.mxu0 0.0
    %1718 = vmatpush2.msra.mxu0 0.0
    %1719 = vmatprep.subr.mxu0 0.0
    %1720 = vmatpush2.msra.mxu0 0.0
    %1721 = vmatprep.subr.mxu0 0.0
    %1722 = vmatpush2.msra.mxu0 0.0
    %1723 = vmatprep.subr.mxu0 0.0
    %1724 = vmatpush2.msra.mxu0 0.0
    %1725 = vmatprep.subr.mxu0 0.0
    %1726 = vmatpush2.msra.mxu0 0.0
    %1727 = vmatprep.mubr.f32.mxu0 0.0
    %1728 = vmatmul.mubr.f32.gmra.mxu0 %v314
    %v1729 = vpop.f32.mrf.mxu0
    %v1730 = vadd.f32 %v296, %v1729
    %v1731 = vpop.f32.mrf.mxu0
    %1732 = vmatprep.mubr.f32.mxu0 0.0
    %1733 = vmatmul.mubr.f32.gmra.mxu0 %v317
    %v1734 = vpop.f32.mrf.mxu0
    %v1735 = vadd.f32 %v301, %v1734
    %v1736 = vpop.f32.mrf.mxu0
    %1737 = vmatprep.mubr.f32.mxu0 0.0
    %1738 = vmatmul.mubr.f32.gmra.mxu0 %v320
    %v1739 = vpop.f32.mrf.mxu0
    %v1740 = vadd.f32 %v306, %v1739
    %v1741 = vpop.f32.mrf.mxu0
    %1742 = vmatprep.mubr.f32.mxu0 0.0
    %1743 = vmatmul.mubr.f32.gmra.mxu0 %v323
    %v1744 = vpop.f32.mrf.mxu0
    %v1745 = vadd.f32 %v311, %v1744
    %v1746 = vpop.f32.mrf.mxu0
    %1747 = vdwg.mxu0
    %v1748 = vxor.u32 %v1730, 2147483648
    %v1749 = vxor.u32 %v1735, 2147483648
    %v1750 = vxor.u32 %v1740, 2147483648
    %v1751 = vxor.u32 %v1745, 2147483648
    %v1752 = vmul.f32 %v1748, 1.442695
    %v1753 = vpow.pop %v1752
    %v1754 = vmul.f32 %v1749, 1.442695
    %v1755 = vpow.pop %v1754
    %v1756 = vmul.f32 %v1750, 1.442695
    %v1757 = vpow.pop %v1756
    %v1758 = vmul.f32 %v1751, 1.442695
    %v1759 = vpow.pop %v1758
    %v1760 = vadd.f32 %v1753, 1.0
    %v1761 = vadd.f32 %v1755, 1.0
    %v1762 = vadd.f32 %v1757, 1.0
    %v1763 = vadd.f32 %v1759, 1.0
    %v1764 = vrcp.pop %v1760
    %v1765 = vmul.f32 1.0, %v1764
    %v1766 = vrcp.pop %v1761
    %v1767 = vmul.f32 1.0, %v1766
    %v1768 = vrcp.pop %v1762
    %v1769 = vmul.f32 1.0, %v1768
    %v1770 = vrcp.pop %v1763
    %v1771 = vmul.f32 1.0, %v1770
    %v1772 = vmul.f32 %v1730, %v1765
    %v1773 = vmul.f32 %v1735, %v1767
    %v1774 = vmul.f32 %v1740, %v1769
    %v1775 = vmul.f32 %v1745, %v1771
    %v1776 = vmul.f32 %v1772, %v441
    %v1777 = vmul.f32 %v1773, %v446
    %v1778 = vmul.f32 %v1774, %v451
    %v1779 = vmul.f32 %v1775, %v456
    %v1780 = vsel %vm462, %v1776, 0.0
    %v1781 = vsel %vm462, %v1777, 0.0
    %v1782 = vadd.f32 %v1780, %v1781
    %v1783 = vsel %vm462, %v1778, 0.0
    %v1784 = vadd.f32 %v1782, %v1783
    %v1785 = vsel %vm462, %v1779, 0.0
    %v1786 = vadd.f32 %v1784, %v1785
    %v1787 = vrot.slane %v1786, 4
    %v1788 = vadd.f32 %v1786, %v1787
    %v1789 = vrot.slane %v1788, 2
    %v1790 = vadd.f32 %v1788, %v1789
    %v1791 = vrot.slane %v1790, 1
    %v1792 = vadd.f32 %v1790, %v1791
    %v1793 = vadd.f32 %v1792, %v476
    %1794 = vst.msk [vmem:[#allocation4 + $0x5] sm:$0x1] %vm478, %v1793
    %s1795 = scalar_lea.vmem %s0, 24
    %v1796 = vld [vmem:[%s1795] sm:$0x7]
    %v1797 = vlaneseq
    %v1798 = vshrl.u32 %v1797, 7
    %v1799 = vsub.s32 0, %v1798
    %v1800 = vrot.slane %v1796, %v1799
    %v1801 = vmul.f32 %v82, %v1800
    %v1802 = vmul.f32 %v87, %v1800
    %v1803 = vmul.f32 %v92, %v1800
    %v1804 = vmul.f32 %v97, %v1800
    %v1805 = vadd.f32 %v110, %v1801
    %v1806 = vadd.f32 %v115, %v1802
    %v1807 = vadd.f32 %v120, %v1803
    %v1808 = vadd.f32 %v125, %v1804
    %v1809 = vlaneseq
    %v1810 = vshrl.u32 %v1809, 7
    %v1811 = vsub.s32 1, %v1810
    %v1812 = vrot.slane %v1796, %v1811
    %v1813 = vmul.f32 %v133, %v1812
    %v1814 = vmul.f32 %v137, %v1812
    %v1815 = vmul.f32 %v141, %v1812
    %v1816 = vmul.f32 %v145, %v1812
    %v1817 = vadd.f32 %v1805, %v1813
    %v1818 = vadd.f32 %v1806, %v1814
    %v1819 = vadd.f32 %v1807, %v1815
    %v1820 = vadd.f32 %v1808, %v1816
    %v1821 = vlaneseq
    %v1822 = vshrl.u32 %v1821, 7
    %v1823 = vsub.s32 2, %v1822
    %v1824 = vrot.slane %v1796, %v1823
    %v1825 = vmul.f32 %v161, %v1824
    %v1826 = vmul.f32 %v165, %v1824
    %v1827 = vmul.f32 %v169, %v1824
    %v1828 = vmul.f32 %v173, %v1824
    %v1829 = vadd.f32 %v1817, %v1825
    %v1830 = vadd.f32 %v1818, %v1826
    %v1831 = vadd.f32 %v1819, %v1827
    %v1832 = vadd.f32 %v1820, %v1828
    %1833 = vmatprep.subr.mxu0 0.0
    %1834 = vmatpush1.msra.mxu0 0.0
    %1835 = vmatprep.subr.mxu0 0.0
    %1836 = vmatpush1.msra.mxu0 0.0
    %1837 = vmatprep.subr.mxu0 0.0
    %1838 = vmatpush1.msra.mxu0 0.0
    %1839 = vmatprep.subr.mxu0 0.0
    %1840 = vmatpush1.msra.mxu0 0.0
    %1841 = vmatprep.subr.mxu0 0.0
    %1842 = vmatpush1.msra.mxu0 0.0
    %1843 = vmatprep.subr.mxu0 0.0
    %1844 = vmatpush1.msra.mxu0 0.0
    %1845 = vmatprep.subr.mxu0 0.0
    %1846 = vmatpush1.msra.mxu0 0.0
    %1847 = vmatprep.subr.mxu0 0.0
    %1848 = vmatpush1.msra.mxu0 0.0
    %1849 = vmatprep.subr.mxu0 0.0
    %1850 = vmatpush1.msra.mxu0 0.0
    %1851 = vmatprep.subr.mxu0 0.0
    %1852 = vmatpush1.msra.mxu0 0.0
    %1853 = vmatprep.subr.mxu0 0.0
    %1854 = vmatpush1.msra.mxu0 0.0
    %1855 = vmatprep.subr.mxu0 0.0
    %1856 = vmatpush1.msra.mxu0 0.0
    %1857 = vmatprep.subr.mxu0 0.0
    %1858 = vmatpush1.msra.mxu0 %v1662
    %1859 = vmatprep.subr.mxu0 0.0
    %1860 = vmatpush1.msra.mxu0 %v1661
    %1861 = vmatprep.subr.mxu0 0.0
    %1862 = vmatpush1.msra.mxu0 %v1660
    %1863 = vmatprep.subr.mxu0 0.0
    %1864 = vmatpush1.msra.mxu0 %v1659
    %1865 = vmatprep.subr.mxu0 0.0
    %1866 = vmatpush2.msra.mxu0 0.0
    %1867 = vmatprep.subr.mxu0 0.0
    %1868 = vmatpush2.msra.mxu0 0.0
    %1869 = vmatprep.subr.mxu0 0.0
    %1870 = vmatpush2.msra.mxu0 0.0
    %1871 = vmatprep.subr.mxu0 0.0
    %1872 = vmatpush2.msra.mxu0 0.0
    %1873 = vmatprep.subr.mxu0 0.0
    %1874 = vmatpush2.msra.mxu0 0.0
    %1875 = vmatprep.subr.mxu0 0.0
    %1876 = vmatpush2.msra.mxu0 0.0
    %1877 = vmatprep.subr.mxu0 0.0
    %1878 = vmatpush2.msra.mxu0 0.0
    %1879 = vmatprep.subr.mxu0 0.0
    %1880 = vmatpush2.msra.mxu0 0.0
    %1881 = vmatprep.subr.mxu0 0.0
    %1882 = vmatpush2.msra.mxu0 0.0
    %1883 = vmatprep.subr.mxu0 0.0
    %1884 = vmatpush2.msra.mxu0 0.0
    %1885 = vmatprep.subr.mxu0 0.0
    %1886 = vmatpush2.msra.mxu0 0.0
    %1887 = vmatprep.subr.mxu0 0.0
    %1888 = vmatpush2.msra.mxu0 0.0
    %1889 = vmatprep.subr.mxu0 0.0
    %1890 = vmatpush2.msra.mxu0 0.0
    %1891 = vmatprep.subr.mxu0 0.0
    %1892 = vmatpush2.msra.mxu0 0.0
    %1893 = vmatprep.subr.mxu0 0.0
    %1894 = vmatpush2.msra.mxu0 0.0
    %1895 = vmatprep.subr.mxu0 0.0
    %1896 = vmatpush2.msra.mxu0 0.0
    %1897 = vmatprep.mubr.f32.mxu0 0.0
    %1898 = vmatmul.mubr.f32.gmra.mxu0 %v189
    %v1899 = vpop.f32.mrf.mxu0
    %v1900 = vadd.f32 0.0, %v1899
    %v1901 = vpop.f32.mrf.mxu0
    %1902 = vmatprep.mubr.f32.mxu0 0.0
    %1903 = vmatmul.mubr.f32.gmra.mxu0 %v192
    %v1904 = vpop.f32.mrf.mxu0
    %v1905 = vadd.f32 0.0, %v1904
    %v1906 = vpop.f32.mrf.mxu0
    %1907 = vmatprep.mubr.f32.mxu0 0.0
    %1908 = vmatmul.mubr.f32.gmra.mxu0 %v195
    %v1909 = vpop.f32.mrf.mxu0
    %v1910 = vadd.f32 0.0, %v1909
    %v1911 = vpop.f32.mrf.mxu0
    %1912 = vmatprep.mubr.f32.mxu0 0.0
    %1913 = vmatmul.mubr.f32.gmra.mxu0 %v198
    %v1914 = vpop.f32.mrf.mxu0
    %v1915 = vadd.f32 0.0, %v1914
    %v1916 = vpop.f32.mrf.mxu0
    %1917 = vdwg.mxu0
    %v1918 = vadd.f32 %v1829, %v1900
    %v1919 = vadd.f32 %v1830, %v1905
    %v1920 = vadd.f32 %v1831, %v1910
    %v1921 = vadd.f32 %v1832, %v1915
    %v1922 = vtanh.pop %v1918
    %v1923 = vtanh.pop %v1919
    %v1924 = vtanh.pop %v1920
    %v1925 = vtanh.pop %v1921
    %1926 = vmatprep.subr.mxu0 0.0
    %1927 = vmatpush1.msra.mxu0 0.0
    %1928 = vmatprep.subr.mxu0 0.0
    %1929 = vmatpush1.msra.mxu0 0.0
    %1930 = vmatprep.subr.mxu0 0.0
    %1931 = vmatpush1.msra.mxu0 0.0
    %1932 = vmatprep.subr.mxu0 0.0
    %1933 = vmatpush1.msra.mxu0 0.0
    %1934 = vmatprep.subr.mxu0 0.0
    %1935 = vmatpush1.msra.mxu0 0.0
    %1936 = vmatprep.subr.mxu0 0.0
    %1937 = vmatpush1.msra.mxu0 0.0
    %1938 = vmatprep.subr.mxu0 0.0
    %1939 = vmatpush1.msra.mxu0 0.0
    %1940 = vmatprep.subr.mxu0 0.0
    %1941 = vmatpush1.msra.mxu0 0.0
    %1942 = vmatprep.subr.mxu0 0.0
    %1943 = vmatpush1.msra.mxu0 0.0
    %1944 = vmatprep.subr.mxu0 0.0
    %1945 = vmatpush1.msra.mxu0 0.0
    %1946 = vmatprep.subr.mxu0 0.0
    %1947 = vmatpush1.msra.mxu0 0.0
    %1948 = vmatprep.subr.mxu0 0.0
    %1949 = vmatpush1.msra.mxu0 0.0
    %1950 = vmatprep.subr.mxu0 0.0
    %1951 = vmatpush1.msra.mxu0 %v1925
    %1952 = vmatprep.subr.mxu0 0.0
    %1953 = vmatpush1.msra.mxu0 %v1924
    %1954 = vmatprep.subr.mxu0 0.0
    %1955 = vmatpush1.msra.mxu0 %v1923
    %1956 = vmatprep.subr.mxu0 0.0
    %1957 = vmatpush1.msra.mxu0 %v1922
    %1958 = vmatprep.subr.mxu0 0.0
    %1959 = vmatpush2.msra.mxu0 0.0
    %1960 = vmatprep.subr.mxu0 0.0
    %1961 = vmatpush2.msra.mxu0 0.0
    %1962 = vmatprep.subr.mxu0 0.0
    %1963 = vmatpush2.msra.mxu0 0.0
    %1964 = vmatprep.subr.mxu0 0.0
    %1965 = vmatpush2.msra.mxu0 0.0
    %1966 = vmatprep.subr.mxu0 0.0
    %1967 = vmatpush2.msra.mxu0 0.0
    %1968 = vmatprep.subr.mxu0 0.0
    %1969 = vmatpush2.msra.mxu0 0.0
    %1970 = vmatprep.subr.mxu0 0.0
    %1971 = vmatpush2.msra.mxu0 0.0
    %1972 = vmatprep.subr.mxu0 0.0
    %1973 = vmatpush2.msra.mxu0 0.0
    %1974 = vmatprep.subr.mxu0 0.0
    %1975 = vmatpush2.msra.mxu0 0.0
    %1976 = vmatprep.subr.mxu0 0.0
    %1977 = vmatpush2.msra.mxu0 0.0
    %1978 = vmatprep.subr.mxu0 0.0
    %1979 = vmatpush2.msra.mxu0 0.0
    %1980 = vmatprep.subr.mxu0 0.0
    %1981 = vmatpush2.msra.mxu0 0.0
    %1982 = vmatprep.subr.mxu0 0.0
    %1983 = vmatpush2.msra.mxu0 0.0
    %1984 = vmatprep.subr.mxu0 0.0
    %1985 = vmatpush2.msra.mxu0 0.0
    %1986 = vmatprep.subr.mxu0 0.0
    %1987 = vmatpush2.msra.mxu0 0.0
    %1988 = vmatprep.subr.mxu0 0.0
    %1989 = vmatpush2.msra.mxu0 0.0
    %1990 = vmatprep.mubr.f32.mxu0 0.0
    %1991 = vmatmul.mubr.f32.gmra.mxu0 %v314
    %v1992 = vpop.f32.mrf.mxu0
    %v1993 = vadd.f32 %v296, %v1992
    %v1994 = vpop.f32.mrf.mxu0
    %1995 = vmatprep.mubr.f32.mxu0 0.0
    %1996 = vmatmul.mubr.f32.gmra.mxu0 %v317
    %v1997 = vpop.f32.mrf.mxu0
    %v1998 = vadd.f32 %v301, %v1997
    %v1999 = vpop.f32.mrf.mxu0
    %2000 = vmatprep.mubr.f32.mxu0 0.0
    %2001 = vmatmul.mubr.f32.gmra.mxu0 %v320
    %v2002 = vpop.f32.mrf.mxu0
    %v2003 = vadd.f32 %v306, %v2002
    %v2004 = vpop.f32.mrf.mxu0
    %2005 = vmatprep.mubr.f32.mxu0 0.0
    %2006 = vmatmul.mubr.f32.gmra.mxu0 %v323
    %v2007 = vpop.f32.mrf.mxu0
    %v2008 = vadd.f32 %v311, %v2007
    %v2009 = vpop.f32.mrf.mxu0
    %2010 = vdwg.mxu0
    %v2011 = vxor.u32 %v1993, 2147483648
    %v2012 = vxor.u32 %v1998, 2147483648
    %v2013 = vxor.u32 %v2003, 2147483648
    %v2014 = vxor.u32 %v2008, 2147483648
    %v2015 = vmul.f32 %v2011, 1.442695
    %v2016 = vpow.pop %v2015
    %v2017 = vmul.f32 %v2012, 1.442695
    %v2018 = vpow.pop %v2017
    %v2019 = vmul.f32 %v2013, 1.442695
    %v2020 = vpow.pop %v2019
    %v2021 = vmul.f32 %v2014, 1.442695
    %v2022 = vpow.pop %v2021
    %v2023 = vadd.f32 %v2016, 1.0
    %v2024 = vadd.f32 %v2018, 1.0
    %v2025 = vadd.f32 %v2020, 1.0
    %v2026 = vadd.f32 %v2022, 1.0
    %v2027 = vrcp.pop %v2023
    %v2028 = vmul.f32 1.0, %v2027
    %v2029 = vrcp.pop %v2024
    %v2030 = vmul.f32 1.0, %v2029
    %v2031 = vrcp.pop %v2025
    %v2032 = vmul.f32 1.0, %v2031
    %v2033 = vrcp.pop %v2026
    %v2034 = vmul.f32 1.0, %v2033
    %v2035 = vmul.f32 %v1993, %v2028
    %v2036 = vmul.f32 %v1998, %v2030
    %v2037 = vmul.f32 %v2003, %v2032
    %v2038 = vmul.f32 %v2008, %v2034
    %v2039 = vmul.f32 %v2035, %v441
    %v2040 = vmul.f32 %v2036, %v446
    %v2041 = vmul.f32 %v2037, %v451
    %v2042 = vmul.f32 %v2038, %v456
    %v2043 = vsel %vm462, %v2039, 0.0
    %v2044 = vsel %vm462, %v2040, 0.0
    %v2045 = vadd.f32 %v2043, %v2044
    %v2046 = vsel %vm462, %v2041, 0.0
    %v2047 = vadd.f32 %v2045, %v2046
    %v2048 = vsel %vm462, %v2042, 0.0
    %v2049 = vadd.f32 %v2047, %v2048
    %v2050 = vrot.slane %v2049, 4
    %v2051 = vadd.f32 %v2049, %v2050
    %v2052 = vrot.slane %v2051, 2
    %v2053 = vadd.f32 %v2051, %v2052
    %v2054 = vrot.slane %v2053, 1
    %v2055 = vadd.f32 %v2053, %v2054
    %v2056 = vadd.f32 %v2055, %v476
    %2057 = vst.msk [vmem:[#allocation4 + $0x6] sm:$0x1] %vm478, %v2056
    %s2058 = scalar_lea.vmem %s0, 28
    %v2059 = vld [vmem:[%s2058] sm:$0x7]
    %v2060 = vlaneseq
    %v2061 = vshrl.u32 %v2060, 7
    %v2062 = vsub.s32 0, %v2061
    %v2063 = vrot.slane %v2059, %v2062
    %v2064 = vmul.f32 %v82, %v2063
    %v2065 = vmul.f32 %v87, %v2063
    %v2066 = vmul.f32 %v92, %v2063
    %v2067 = vmul.f32 %v97, %v2063
    %v2068 = vadd.f32 %v110, %v2064
    %v2069 = vadd.f32 %v115, %v2065
    %v2070 = vadd.f32 %v120, %v2066
    %v2071 = vadd.f32 %v125, %v2067
    %v2072 = vlaneseq
    %v2073 = vshrl.u32 %v2072, 7
    %v2074 = vsub.s32 1, %v2073
    %v2075 = vrot.slane %v2059, %v2074
    %v2076 = vmul.f32 %v133, %v2075
    %v2077 = vmul.f32 %v137, %v2075
    %v2078 = vmul.f32 %v141, %v2075
    %v2079 = vmul.f32 %v145, %v2075
    %v2080 = vadd.f32 %v2068, %v2076
    %v2081 = vadd.f32 %v2069, %v2077
    %v2082 = vadd.f32 %v2070, %v2078
    %v2083 = vadd.f32 %v2071, %v2079
    %v2084 = vlaneseq
    %v2085 = vshrl.u32 %v2084, 7
    %v2086 = vsub.s32 2, %v2085
    %v2087 = vrot.slane %v2059, %v2086
    %v2088 = vmul.f32 %v161, %v2087
    %v2089 = vmul.f32 %v165, %v2087
    %v2090 = vmul.f32 %v169, %v2087
    %v2091 = vmul.f32 %v173, %v2087
    %v2092 = vadd.f32 %v2080, %v2088
    %v2093 = vadd.f32 %v2081, %v2089
    %v2094 = vadd.f32 %v2082, %v2090
    %v2095 = vadd.f32 %v2083, %v2091
    %2096 = vmatprep.subr.mxu0 0.0
    %2097 = vmatpush1.msra.mxu0 0.0
    %2098 = vmatprep.subr.mxu0 0.0
    %2099 = vmatpush1.msra.mxu0 0.0
    %2100 = vmatprep.subr.mxu0 0.0
    %2101 = vmatpush1.msra.mxu0 0.0
    %2102 = vmatprep.subr.mxu0 0.0
    %2103 = vmatpush1.msra.mxu0 0.0
    %2104 = vmatprep.subr.mxu0 0.0
    %2105 = vmatpush1.msra.mxu0 0.0
    %2106 = vmatprep.subr.mxu0 0.0
    %2107 = vmatpush1.msra.mxu0 0.0
    %2108 = vmatprep.subr.mxu0 0.0
    %2109 = vmatpush1.msra.mxu0 0.0
    %2110 = vmatprep.subr.mxu0 0.0
    %2111 = vmatpush1.msra.mxu0 0.0
    %2112 = vmatprep.subr.mxu0 0.0
    %2113 = vmatpush1.msra.mxu0 0.0
    %2114 = vmatprep.subr.mxu0 0.0
    %2115 = vmatpush1.msra.mxu0 0.0
    %2116 = vmatprep.subr.mxu0 0.0
    %2117 = vmatpush1.msra.mxu0 0.0
    %2118 = vmatprep.subr.mxu0 0.0
    %2119 = vmatpush1.msra.mxu0 0.0
    %2120 = vmatprep.subr.mxu0 0.0
    %2121 = vmatpush1.msra.mxu0 %v1925
    %2122 = vmatprep.subr.mxu0 0.0
    %2123 = vmatpush1.msra.mxu0 %v1924
    %2124 = vmatprep.subr.mxu0 0.0
    %2125 = vmatpush1.msra.mxu0 %v1923
    %2126 = vmatprep.subr.mxu0 0.0
    %2127 = vmatpush1.msra.mxu0 %v1922
    %2128 = vmatprep.subr.mxu0 0.0
    %2129 = vmatpush2.msra.mxu0 0.0
    %2130 = vmatprep.subr.mxu0 0.0
    %2131 = vmatpush2.msra.mxu0 0.0
    %2132 = vmatprep.subr.mxu0 0.0
    %2133 = vmatpush2.msra.mxu0 0.0
    %2134 = vmatprep.subr.mxu0 0.0
    %2135 = vmatpush2.msra.mxu0 0.0
    %2136 = vmatprep.subr.mxu0 0.0
    %2137 = vmatpush2.msra.mxu0 0.0
    %2138 = vmatprep.subr.mxu0 0.0
    %2139 = vmatpush2.msra.mxu0 0.0
    %2140 = vmatprep.subr.mxu0 0.0
    %2141 = vmatpush2.msra.mxu0 0.0
    %2142 = vmatprep.subr.mxu0 0.0
    %2143 = vmatpush2.msra.mxu0 0.0
    %2144 = vmatprep.subr.mxu0 0.0
    %2145 = vmatpush2.msra.mxu0 0.0
    %2146 = vmatprep.subr.mxu0 0.0
    %2147 = vmatpush2.msra.mxu0 0.0
    %2148 = vmatprep.subr.mxu0 0.0
    %2149 = vmatpush2.msra.mxu0 0.0
    %2150 = vmatprep.subr.mxu0 0.0
    %2151 = vmatpush2.msra.mxu0 0.0
    %2152 = vmatprep.subr.mxu0 0.0
    %2153 = vmatpush2.msra.mxu0 0.0
    %2154 = vmatprep.subr.mxu0 0.0
    %2155 = vmatpush2.msra.mxu0 0.0
    %2156 = vmatprep.subr.mxu0 0.0
    %2157 = vmatpush2.msra.mxu0 0.0
    %2158 = vmatprep.subr.mxu0 0.0
    %2159 = vmatpush2.msra.mxu0 0.0
    %2160 = vmatprep.mubr.f32.mxu0 0.0
    %2161 = vmatmul.mubr.f32.gmra.mxu0 %v189
    %v2162 = vpop.f32.mrf.mxu0
    %v2163 = vadd.f32 0.0, %v2162
    %v2164 = vpop.f32.mrf.mxu0
    %2165 = vmatprep.mubr.f32.mxu0 0.0
    %2166 = vmatmul.mubr.f32.gmra.mxu0 %v192
    %v2167 = vpop.f32.mrf.mxu0
    %v2168 = vadd.f32 0.0, %v2167
    %v2169 = vpop.f32.mrf.mxu0
    %2170 = vmatprep.mubr.f32.mxu0 0.0
    %2171 = vmatmul.mubr.f32.gmra.mxu0 %v195
    %v2172 = vpop.f32.mrf.mxu0
    %v2173 = vadd.f32 0.0, %v2172
    %v2174 = vpop.f32.mrf.mxu0
    %2175 = vmatprep.mubr.f32.mxu0 0.0
    %2176 = vmatmul.mubr.f32.gmra.mxu0 %v198
    %v2177 = vpop.f32.mrf.mxu0
    %v2178 = vadd.f32 0.0, %v2177
    %v2179 = vpop.f32.mrf.mxu0
    %2180 = vdwg.mxu0
    %v2181 = vadd.f32 %v2092, %v2163
    %v2182 = vadd.f32 %v2093, %v2168
    %v2183 = vadd.f32 %v2094, %v2173
    %v2184 = vadd.f32 %v2095, %v2178
    %v2185 = vtanh.pop %v2181
    %v2186 = vtanh.pop %v2182
    %v2187 = vtanh.pop %v2183
    %v2188 = vtanh.pop %v2184
    %2189 = vmatprep.subr.mxu0 0.0
    %2190 = vmatpush1.msra.mxu0 0.0
    %2191 = vmatprep.subr.mxu0 0.0
    %2192 = vmatpush1.msra.mxu0 0.0
    %2193 = vmatprep.subr.mxu0 0.0
    %2194 = vmatpush1.msra.mxu0 0.0
    %2195 = vmatprep.subr.mxu0 0.0
    %2196 = vmatpush1.msra.mxu0 0.0
    %2197 = vmatprep.subr.mxu0 0.0
    %2198 = vmatpush1.msra.mxu0 0.0
    %2199 = vmatprep.subr.mxu0 0.0
    %2200 = vmatpush1.msra.mxu0 0.0
    %2201 = vmatprep.subr.mxu0 0.0
    %2202 = vmatpush1.msra.mxu0 0.0
    %2203 = vmatprep.subr.mxu0 0.0
    %2204 = vmatpush1.msra.mxu0 0.0
    %2205 = vmatprep.subr.mxu0 0.0
    %2206 = vmatpush1.msra.mxu0 0.0
    %2207 = vmatprep.subr.mxu0 0.0
    %2208 = vmatpush1.msra.mxu0 0.0
    %2209 = vmatprep.subr.mxu0 0.0
    %2210 = vmatpush1.msra.mxu0 0.0
    %2211 = vmatprep.subr.mxu0 0.0
    %2212 = vmatpush1.msra.mxu0 0.0
    %2213 = vmatprep.subr.mxu0 0.0
    %2214 = vmatpush1.msra.mxu0 %v2188
    %2215 = vmatprep.subr.mxu0 0.0
    %2216 = vmatpush1.msra.mxu0 %v2187
    %2217 = vmatprep.subr.mxu0 0.0
    %2218 = vmatpush1.msra.mxu0 %v2186
    %2219 = vmatprep.subr.mxu0 0.0
    %2220 = vmatpush1.msra.mxu0 %v2185
    %2221 = vmatprep.subr.mxu0 0.0
    %2222 = vmatpush2.msra.mxu0 0.0
    %2223 = vmatprep.subr.mxu0 0.0
    %2224 = vmatpush2.msra.mxu0 0.0
    %2225 = vmatprep.subr.mxu0 0.0
    %2226 = vmatpush2.msra.mxu0 0.0
    %2227 = vmatprep.subr.mxu0 0.0
    %2228 = vmatpush2.msra.mxu0 0.0
    %2229 = vmatprep.subr.mxu0 0.0
    %2230 = vmatpush2.msra.mxu0 0.0
    %2231 = vmatprep.subr.mxu0 0.0
    %2232 = vmatpush2.msra.mxu0 0.0
    %2233 = vmatprep.subr.mxu0 0.0
    %2234 = vmatpush2.msra.mxu0 0.0
    %2235 = vmatprep.subr.mxu0 0.0
    %2236 = vmatpush2.msra.mxu0 0.0
    %2237 = vmatprep.subr.mxu0 0.0
    %2238 = vmatpush2.msra.mxu0 0.0
    %2239 = vmatprep.subr.mxu0 0.0
    %2240 = vmatpush2.msra.mxu0 0.0
    %2241 = vmatprep.subr.mxu0 0.0
    %2242 = vmatpush2.msra.mxu0 0.0
    %2243 = vmatprep.subr.mxu0 0.0
    %2244 = vmatpush2.msra.mxu0 0.0
    %2245 = vmatprep.subr.mxu0 0.0
    %2246 = vmatpush2.msra.mxu0 0.0
    %2247 = vmatprep.subr.mxu0 0.0
    %2248 = vmatpush2.msra.mxu0 0.0
    %2249 = vmatprep.subr.mxu0 0.0
    %2250 = vmatpush2.msra.mxu0 0.0
    %2251 = vmatprep.subr.mxu0 0.0
    %2252 = vmatpush2.msra.mxu0 0.0
    %2253 = vmatprep.mubr.f32.mxu0 0.0
    %2254 = vmatmul.mubr.f32.gmra.mxu0 %v314
    %v2255 = vpop.f32.mrf.mxu0
    %v2256 = vadd.f32 %v296, %v2255
    %v2257 = vpop.f32.mrf.mxu0
    %2258 = vmatprep.mubr.f32.mxu0 0.0
    %2259 = vmatmul.mubr.f32.gmra.mxu0 %v317
    %v2260 = vpop.f32.mrf.mxu0
    %v2261 = vadd.f32 %v301, %v2260
    %v2262 = vpop.f32.mrf.mxu0
    %2263 = vmatprep.mubr.f32.mxu0 0.0
    %2264 = vmatmul.mubr.f32.gmra.mxu0 %v320
    %v2265 = vpop.f32.mrf.mxu0
    %v2266 = vadd.f32 %v306, %v2265
    %v2267 = vpop.f32.mrf.mxu0
    %2268 = vmatprep.mubr.f32.mxu0 0.0
    %2269 = vmatmul.mubr.f32.gmra.mxu0 %v323
    %v2270 = vpop.f32.mrf.mxu0
    %v2271 = vadd.f32 %v311, %v2270
    %v2272 = vpop.f32.mrf.mxu0
    %2273 = vdwg.mxu0
    %v2274 = vxor.u32 %v2256, 2147483648
    %v2275 = vxor.u32 %v2261, 2147483648
    %v2276 = vxor.u32 %v2266, 2147483648
    %v2277 = vxor.u32 %v2271, 2147483648
    %v2278 = vmul.f32 %v2274, 1.442695
    %v2279 = vpow.pop %v2278
    %v2280 = vmul.f32 %v2275, 1.442695
    %v2281 = vpow.pop %v2280
    %v2282 = vmul.f32 %v2276, 1.442695
    %v2283 = vpow.pop %v2282
    %v2284 = vmul.f32 %v2277, 1.442695
    %v2285 = vpow.pop %v2284
    %v2286 = vadd.f32 %v2279, 1.0
    %v2287 = vadd.f32 %v2281, 1.0
    %v2288 = vadd.f32 %v2283, 1.0
    %v2289 = vadd.f32 %v2285, 1.0
    %v2290 = vrcp.pop %v2286
    %v2291 = vmul.f32 1.0, %v2290
    %v2292 = vrcp.pop %v2287
    %v2293 = vmul.f32 1.0, %v2292
    %v2294 = vrcp.pop %v2288
    %v2295 = vmul.f32 1.0, %v2294
    %v2296 = vrcp.pop %v2289
    %v2297 = vmul.f32 1.0, %v2296
    %v2298 = vmul.f32 %v2256, %v2291
    %v2299 = vmul.f32 %v2261, %v2293
    %v2300 = vmul.f32 %v2266, %v2295
    %v2301 = vmul.f32 %v2271, %v2297
    %v2302 = vmul.f32 %v2298, %v441
    %v2303 = vmul.f32 %v2299, %v446
    %v2304 = vmul.f32 %v2300, %v451
    %v2305 = vmul.f32 %v2301, %v456
    %v2306 = vsel %vm462, %v2302, 0.0
    %v2307 = vsel %vm462, %v2303, 0.0
    %v2308 = vadd.f32 %v2306, %v2307
    %v2309 = vsel %vm462, %v2304, 0.0
    %v2310 = vadd.f32 %v2308, %v2309
    %v2311 = vsel %vm462, %v2305, 0.0
    %v2312 = vadd.f32 %v2310, %v2311
    %v2313 = vrot.slane %v2312, 4
    %v2314 = vadd.f32 %v2312, %v2313
    %v2315 = vrot.slane %v2314, 2
    %v2316 = vadd.f32 %v2314, %v2315
    %v2317 = vrot.slane %v2316, 1
    %v2318 = vadd.f32 %v2316, %v2317
    %v2319 = vadd.f32 %v2318, %v476
    %2320 = vst.msk [vmem:[#allocation4 + $0x7] sm:$0x1] %vm478, %v2319
    %2321 = vst.msk [vmem:[#allocation2] sm:$0xff] %vm462, %v2185
    %2322 = vst.msk [vmem:[#allocation2 + $0x8] sm:$0xff] %vm462, %v2186
    %2323 = vst.msk [vmem:[#allocation2 + $0x10] sm:$0xff] %vm462, %v2187
    %2324 = vst.msk [vmem:[#allocation2 + $0x18] sm:$0xff] %vm462, %v2188
    %2325 = vst.msk [vmem:[%s10] sm:$0xff] %vm462, %v2185
    %2326 = vst.msk [vmem:[%s10 + $0x8] sm:$0xff] %vm462, %v2186
    %2327 = vst.msk [vmem:[%s10 + $0x10] sm:$0xff] %vm462, %v2187
    %2328 = vst.msk [vmem:[%s10 + $0x18] sm:$0xff] %vm462, %v2188
    // Predicated region
    $region42: #{tpu_custom_call.1} parent=1 // pred_check
      _
    $region43: #{tpu_custom_call.1} parent=1 // pred_check_branch
      %2330 = sbr.rel (0) target = $region45
    $region44: #{tpu_custom_call.1} parent=1 // pred_region
      %s2332 = ssub.s32 128, 128
      %2333 = vsyncadd [#allocation5], %s2332
      %s2335 = sshll.u32 [#allocation4], 4
      %s2336 = int_to_ptr.vmem [resolvable:$true] %s2335
      %2338 = dma.vmem_to_hbm [thread:$0]  %s2336, 128, %s9, [#allocation5]
    $region45: #{tpu_custom_call.1} parent=1 // pred_fallthru
      _
    // Predicated region
    $region46: #{tpu_custom_call.1} parent=1 // pred_check
      _
    $region47: #{tpu_custom_call.1} parent=1 // pred_check_branch
      %2340 = sbr.rel (0) target = $region49
    $region48: #{tpu_custom_call.1} parent=1 // pred_region
      _
    $region49: #{tpu_custom_call.1} parent=1 // pred_fallthru
      _
    // Predicated region
    $region50: #{tpu_custom_call.1} parent=1 // pred_check
      _
    $region51: #{tpu_custom_call.1} parent=1 // pred_check_branch
      %2342 = sbr.rel (0) target = $region53
    $region52: #{tpu_custom_call.1} parent=1 // pred_region
      %2343 = dma.done [#allocation5], 128
    $region53: #{tpu_custom_call.1} parent=1 // pred_fallthru
      _
    // Predicated region
    $region54: #{tpu_custom_call.1} parent=1 // pred_check
      _
    $region55: #{tpu_custom_call.1} parent=1 // pred_check_branch
      %2345 = sbr.rel (0) target = $region57
    $region56: #{tpu_custom_call.1} parent=1 // pred_region
      _
    $region57: #{tpu_custom_call.1} parent=1 // pred_fallthru
      _
    %2346 = vsyncpa [#allocation5], 1

</llo_original>
